<compile_context>
chip_gen: v7x
topology: tpu7x:2x2x1
jax: 0.10.0
libtpu: 0.0.40
codegen_flags: <defaults>
</compile_context>

<pallas_src>
import jax
import jax.numpy as jnp
from jax.scipy.linalg import block_diag
from jax.experimental import pallas as pl
from jax.experimental.pallas import tpu as pltpu

# ---- CNNet(n_series, n_output, pooling_strategy='max') hyper-parameters -----
N_SERIES = 4           # in_channels of conv1
N_OUTPUT = 8           # fc output features
KSIZE = 3
C1, C2, C3 = 64, 64, 32
ADAPT_OUT = 32         # AdaptiveMaxPool1d(output_size=32)

# Sequence length chosen so the adaptive-pool input length divides evenly by 32.
L_IN = 270
L1 = L_IN - KSIZE + 1        # 268  conv1 out
LP1 = L1 // 2                # 134  pool1 out
L2 = LP1 - KSIZE + 1         # 132  conv2 out
LP2 = L2 // 2                # 66   pool2 out
L3 = LP2 - KSIZE + 1         # 64   conv3 out
BIN = L3 // ADAPT_OUT        # 2    adaptive-pool bin size
# TODO(synk): general AdaptiveMaxPool1d with non-divisible bins not implemented.
assert L3 % ADAPT_OUT == 0 and BIN == 2

# Padded per-sample strides of the flattened (row = sample*stride + position)
# layout.  Each stage's stride is exactly half of its source stride so pooling
# and im2col are global stride-2 reads; each stride also covers the valid rows.
A1 = 272                     # conv1-out stride  (>= L1,  = 2*A2)
A2 = 136                     # conv2-out / pool1 stride (>= LP1, L2, = 2*A3)
A3 = 68                      # conv3-out / pool2 stride (>= LP2, L3, = 2*Q)
Q = 34                       # adaptive-pool stride (>= ADAPT_OUT)
assert A1 == 2 * A2 and A2 == 2 * A3 and A3 == 2 * Q
assert A1 >= L1 and A2 >= max(LP1, L2) and A3 >= max(LP2, L3) and Q >= ADAPT_OUT

B_TILE_MAX = 16              # samples per grid step (clamped per call)


def _make_kernel(b):
    """Kernel for a tile of `b` samples (all sizes are compile-time constants)."""
    ba1, ba2, ba3, bq = b * A1, b * A2, b * A3, b * Q

    def kernel(x_ref, w1_ref, b1_ref, w2_ref, b2_ref, w3_ref, b3_ref,
               wbig_ref, bfc_ref, o_ref, s1, s2, s3):
        # ---- conv1 + ReLU: ONE (b*A1, 12) x (12, 64) MXU call (pre-im2col'd) ----
        a1 = jnp.dot(x_ref[...], w1_ref[...], preferred_element_type=jnp.float32)
        s1[pl.ds(0, ba1), :] = jnp.maximum(a1 + b1_ref[...], 0.0)
        s1[pl.ds(ba1, 8), :] = jnp.zeros((8, C1), jnp.float32)   # finite over-read tail
        # TODO(synk): F.dropout(p=0.2) (PyTorch default training=True) is stochastic;
        #             implemented as identity (inference semantics).

        # ---- MaxPool1d(2,2) fused into conv2 im2col: tap-k block = max of the
        #      two stride-2 phases of s1 shifted by k pooled rows.             ----
        lhs2 = jnp.concatenate(
            [jnp.maximum(s1[pl.ds(2 * k, ba2, stride=2), :],
                         s1[pl.ds(2 * k + 1, ba2, stride=2), :])
             for k in range(KSIZE)], axis=1)                      # (b*A2, 192)
        a2 = jnp.dot(lhs2, w2_ref[...], preferred_element_type=jnp.float32)
        s2[pl.ds(0, ba2), :] = jnp.maximum(a2 + b2_ref[...], 0.0)
        s2[pl.ds(ba2, 8), :] = jnp.zeros((8, C2), jnp.float32)

        # ---- MaxPool1d(2,2) fused into conv3 im2col ----
        lhs3 = jnp.concatenate(
            [jnp.maximum(s2[pl.ds(2 * k, ba3, stride=2), :],
                         s2[pl.ds(2 * k + 1, ba3, stride=2), :])
             for k in range(KSIZE)], axis=1)                      # (b*A3, 192)
        a3 = jnp.dot(lhs3, w3_ref[...], preferred_element_type=jnp.float32)
        s3[...] = jnp.maximum(a3 + b3_ref[...], 0.0)

        # ---- AdaptiveMaxPool1d(32): uniform bins of BIN=2 over the 64 valid rows ----
        pooled = jnp.maximum(s3[pl.ds(0, bq, stride=2), :],
                             s3[pl.ds(1, bq, stride=2), :])       # (b*Q, 32)

        # ---- Linear(32 -> 8) for the whole tile: one block-diagonal matmul.
        #      Padded pooled rows (j=32..Q-1 per sample) hit zero weight columns. ----
        out = jnp.dot(wbig_ref[...], pooled, preferred_element_type=jnp.float32)
        o_ref[0] = (out + bfc_ref[...]).astype(o_ref.dtype)

    return kernel


def cnnet_forward(x_ncl, params, b_tile_max=B_TILE_MAX):
    """x_ncl: (N, n_series, L_IN) float32 -> (N, 32, n_output), matching PyTorch."""
    w1, b1, w2, b2, w3, b3, wfc, bfc = params
    n = x_ncl.shape[0]
    assert x_ncl.shape[1] == N_SERIES and x_ncl.shape[2] == L_IN

    # >=2 grid blocks whenever n>=2 so v7x's two TensorCores both get work.
    b = max(1, min(b_tile_max, pl.cdiv(n, 2)))
    n_blocks = pl.cdiv(n, b)
    n_pad = n_blocks * b

    # ---- wrapper-side glue (XLA): NCL->NLC, conv1 pre-im2col, pad, flatten ----
    x_nlc = jnp.transpose(x_ncl, (0, 2, 1))                                 # (N, L_IN, 4)
    x_im = jnp.concatenate([x_nlc[:, k:k + L1, :] for k in range(KSIZE)],
                           axis=2)                                          # (N, L1, 12)
    x_im = jnp.pad(x_im, ((0, n_pad - n), (0, A1 - L1), (0, 0)))            # (n_pad, A1, 12)
    x_flat = x_im.reshape(n_pad * A1, KSIZE * N_SERIES)

    # Conv weights as (K*Cin, Cout) matmul weights (feature order = (tap, channel)).
    w1f = jnp.transpose(w1, (2, 1, 0)).reshape(KSIZE * N_SERIES, C1)        # (12, 64)
    w2f = jnp.transpose(w2, (2, 1, 0)).reshape(KSIZE * C1, C2)              # (192, 64)
    w3f = jnp.transpose(w3, (2, 1, 0)).reshape(KSIZE * C2, C3)              # (192, 32)

    # Block-diagonal FC weight: (b*8, b*Q); the Q-ADAPT_OUT padded columns are zero.
    wfc_pad = jnp.pad(wfc, ((0, 0), (0, Q - ADAPT_OUT)))                    # (8, Q)
    w_big = block_diag(*([wfc_pad] * b)) if b > 1 else wfc_pad              # (b*8, b*Q)
    bfc_big = jnp.tile(bfc.reshape(N_OUTPUT, 1), (b, 1))                    # (b*8, 1)

    out_blocks = pl.pallas_call(
        _make_kernel(b),
        out_shape=jax.ShapeDtypeStruct((n_blocks, b * N_OUTPUT, C3), jnp.float32),
        grid=(n_blocks,),
        in_specs=[
            pl.BlockSpec((b * A1, KSIZE * N_SERIES), lambda i: (i, 0)),
            # Weights/biases: constant index maps -> resident, no re-DMA per step.
            pl.BlockSpec((KSIZE * N_SERIES, C1), lambda i: (0, 0)),
            pl.BlockSpec((1, C1), lambda i: (0, 0)),
            pl.BlockSpec((KSIZE * C1, C2), lambda i: (0, 0)),
            pl.BlockSpec((1, C2), lambda i: (0, 0)),
            pl.BlockSpec((KSIZE * C2, C3), lambda i: (0, 0)),
            pl.BlockSpec((1, C3), lambda i: (0, 0)),
            pl.BlockSpec((b * N_OUTPUT, b * Q), lambda i: (0, 0)),
            pl.BlockSpec((b * N_OUTPUT, 1), lambda i: (0, 0)),
        ],
        out_specs=pl.BlockSpec((1, b * N_OUTPUT, C3), lambda i: (i, 0, 0)),
        scratch_shapes=[
            # +8 rows so shifted garbage reads of the last sample stay in (zeroed) bounds.
            pltpu.VMEM((b * A1 + 8, C1), jnp.float32),
            pltpu.VMEM((b * A2 + 8, C2), jnp.float32),
            pltpu.VMEM((b * A3, C3), jnp.float32),
        ],
        compiler_params=pltpu.CompilerParams(
            dimension_semantics=("parallel",),
            vmem_limit_bytes=32 * 1024 * 1024),   # headroom for b_tile up to 16
    )(x_flat, w1f, b1.reshape(1, C1), w2f, b2.reshape(1, C2),
      w3f, b3.reshape(1, C3), w_big, bfc_big)

    # Glue: (blocks, b*8, 32) rows are (sample, output)-ordered -> (N, 32ch, 8out).
    out = out_blocks.reshape(n_pad, N_OUTPUT, C3)
    out = jnp.transpose(out, (0, 2, 1))
    return out[:n]


def cnnet_reference(x_ncl, params):
    """Pure-JAX (XLA) reference with PyTorch semantics, for self-verification."""
    w1, b1, w2, b2, w3, b3, wfc, bfc = params
    dn = ('NCH', 'OIH', 'NCH')

    def conv_relu(x, w, bias):
        y = jax.lax.conv_general_dilated(x, w, (1,), 'VALID', dimension_numbers=dn)
        return jax.nn.relu(y + bias[None, :, None])

    a = conv_relu(x_ncl, w1, b1)
    a = jnp.maximum(a[:, :, 0::2], a[:, :, 1::2])                  # MaxPool1d(2,2)
    a = conv_relu(a, w2, b2)
    a = jnp.maximum(a[:, :, 0::2], a[:, :, 1::2])                  # MaxPool1d(2,2)
    a = conv_relu(a, w3, b3)
    nb, c, l = a.shape
    a = a.reshape(nb, c, ADAPT_OUT, l // ADAPT_OUT).max(axis=-1)   # AdaptiveMaxPool1d(32)
    return jnp.einsum('ncj,oj->nco', a, wfc) + bfc                 # Linear(32, n_output)


def init_params(key):
    """Deterministic init mimicking PyTorch defaults: U(-1/sqrt(fan_in), +)."""
    ks = jax.random.split(key, 8)

    def u(k, shape, fan_in):
        bound = 1.0 / (fan_in ** 0.5)
        return jax.random.uniform(k, shape, jnp.float32, -bound, bound)

    w1 = u(ks[0], (C1, N_SERIES, KSIZE), N_SERIES * KSIZE)   # Conv1d weight (Cout, Cin, K)
    b1 = u(ks[1], (C1,), N_SERIES * KSIZE)
    w2 = u(ks[2], (C2, C1, KSIZE), C1 * KSIZE)
    b2 = u(ks[3], (C2,), C1 * KSIZE)
    w3 = u(ks[4], (C3, C2, KSIZE), C2 * KSIZE)
    b3 = u(ks[5], (C3,), C2 * KSIZE)
    wfc = u(ks[6], (N_OUTPUT, ADAPT_OUT), ADAPT_OUT)         # Linear weight (out, in)
    bfc = u(ks[7], (N_OUTPUT,), ADAPT_OUT)
    return w1, b1, w2, b2, w3, b3, wfc, bfc


if __name__ == "__main__":
    key = jax.random.PRNGKey(0)
    pkey, xkey = jax.random.split(key)
    params = init_params(pkey)
    x = jax.random.normal(xkey, (2, N_SERIES, L_IN), jnp.float32)  # NCL, like PyTorch

    out = cnnet_forward(x, params)
    jax.block_until_ready(out)
    assert out.shape == (2, C3, N_OUTPUT) and out.dtype == jnp.float32

    # Correctness check against a pure-JAX reference (tolerance allows for MXU
    # vs XLA-conv f32 precision differences; a structural bug such as a
    # positions/channels swap would blow far past it).
    ref = cnnet_reference(x, params)
    rel = float(jnp.max(jnp.abs(out - ref)) / (jnp.max(jnp.abs(ref)) + 1e-6))
    assert rel < 3e-2, f"kernel/reference mismatch, max rel err = {rel}"

    print("KERNEL_OK")
</pallas_src>

<mosaic_0001>
module attributes {stable_mosaic.version = 11 : i64} {
  func.func @kernel(%arg0: i32, %arg1: memref<272x12xf32, #tpu.memory_space<vmem>>, %arg2: memref<12x64xf32, #tpu.memory_space<vmem>>, %arg3: memref<1x64xf32, #tpu.memory_space<vmem>>, %arg4: memref<192x64xf32, #tpu.memory_space<vmem>>, %arg5: memref<1x64xf32, #tpu.memory_space<vmem>>, %arg6: memref<192x32xf32, #tpu.memory_space<vmem>>, %arg7: memref<1x32xf32, #tpu.memory_space<vmem>>, %arg8: memref<8x34xf32, #tpu.memory_space<vmem>>, %arg9: memref<8x1xf32, #tpu.memory_space<vmem>>, %arg10: memref<1x8x32xf32, #tpu.memory_space<vmem>>, %arg11: memref<280x64xf32, #tpu.memory_space<vmem>>, %arg12: memref<144x64xf32, #tpu.memory_space<vmem>>, %arg13: memref<68x32xf32, #tpu.memory_space<vmem>>) attributes {dimension_semantics = [#tpu.dimension_semantics<parallel>], iteration_bounds = array<i64: 2>, scalar_prefetch = 0 : i64, scratch_operands = 3 : i64, tpu.core_type = #tpu.core_type<tc>, window_params = [{transform_indices = @transform_0, window_bounds = array<i64: 272, 12>}, {pipeline_mode = #tpu.pipeline_mode<synchronous>, transform_indices = @transform_1, window_bounds = array<i64: 12, 64>}, {pipeline_mode = #tpu.pipeline_mode<synchronous>, transform_indices = @transform_2, window_bounds = array<i64: 1, 64>}, {pipeline_mode = #tpu.pipeline_mode<synchronous>, transform_indices = @transform_3, window_bounds = array<i64: 192, 64>}, {pipeline_mode = #tpu.pipeline_mode<synchronous>, transform_indices = @transform_4, window_bounds = array<i64: 1, 64>}, {pipeline_mode = #tpu.pipeline_mode<synchronous>, transform_indices = @transform_5, window_bounds = array<i64: 192, 32>}, {pipeline_mode = #tpu.pipeline_mode<synchronous>, transform_indices = @transform_6, window_bounds = array<i64: 1, 32>}, {pipeline_mode = #tpu.pipeline_mode<synchronous>, transform_indices = @transform_7, window_bounds = array<i64: 8, 34>}, {pipeline_mode = #tpu.pipeline_mode<synchronous>, transform_indices = @transform_8, window_bounds = array<i64: 8, 1>}, {transform_indices = @transform_9, window_bounds = array<i64: 1, 8, 32>}]} {
    %c0 = arith.constant 0 : index
    %c0_0 = arith.constant 0 : index
    %0 = vector.load %arg1[%c0, %c0_0] : memref<272x12xf32, #tpu.memory_space<vmem>>, vector<272x12xf32>
    %c0_1 = arith.constant 0 : index
    %c0_2 = arith.constant 0 : index
    %1 = vector.load %arg2[%c0_1, %c0_2] : memref<12x64xf32, #tpu.memory_space<vmem>>, vector<12x64xf32>
    %cst = arith.constant dense<0.000000e+00> : vector<272x64xf32>
    %2 = tpu.matmul %0, %1, %cst {dimension_numbers = #tpu.dot_dimension_numbers<[1], [0], [0], [1], [0, 0, 1, 1], [], []>} : vector<272x12xf32>, vector<12x64xf32>, vector<272x64xf32> -> vector<272x64xf32>
    %c0_3 = arith.constant 0 : index
    %c0_4 = arith.constant 0 : index
    %3 = vector.load %arg3[%c0_3, %c0_4] : memref<1x64xf32, #tpu.memory_space<vmem>>, vector<1x64xf32>
    %4 = vector.broadcast %3 : vector<1x64xf32> to vector<272x64xf32>
    %5 = arith.addf %2, %4 : vector<272x64xf32>
    %cst_5 = arith.constant 0.000000e+00 : f32
    %6 = vector.broadcast %cst_5 : f32 to vector<272x64xf32>
    %7 = arith.maximumf %5, %6 : vector<272x64xf32>
    %c0_6 = arith.constant 0 : index
    %c0_7 = arith.constant 0 : index
    %8 = vector.load %arg11[%c0_6, %c0_7] : memref<280x64xf32, #tpu.memory_space<vmem>>, vector<272x64xf32>
    tpu.vector_store %arg11[%c0_6, %c0_7], %7 {strides = array<i32>} : memref<280x64xf32, #tpu.memory_space<vmem>>, vector<272x64xf32>,
    %cst_8 = arith.constant 0.000000e+00 : f32
    %9 = vector.broadcast %cst_8 : f32 to vector<8x64xf32>
    %c272 = arith.constant 272 : index
    %c0_9 = arith.constant 0 : index
    %10 = vector.load %arg11[%c272, %c0_9] : memref<280x64xf32, #tpu.memory_space<vmem>>, vector<8x64xf32>
    tpu.vector_store %arg11[%c272, %c0_9], %9 {strides = array<i32>} : memref<280x64xf32, #tpu.memory_space<vmem>>, vector<8x64xf32>,
    %c0_10 = arith.constant 0 : index
    %c0_11 = arith.constant 0 : index
    %11 = tpu.strided_load %arg11[%c0_10, %c0_11] {strides = array<i32: 2, 1>} : memref<280x64xf32, #tpu.memory_space<vmem>>, vector<136x64xf32>
    %c1 = arith.constant 1 : index
    %c0_12 = arith.constant 0 : index
    %12 = tpu.strided_load %arg11[%c1, %c0_12] {strides = array<i32: 2, 1>} : memref<280x64xf32, #tpu.memory_space<vmem>>, vector<136x64xf32>
    %13 = arith.maximumf %11, %12 : vector<136x64xf32>
    %c2 = arith.constant 2 : index
    %c0_13 = arith.constant 0 : index
    %14 = tpu.strided_load %arg11[%c2, %c0_13] {strides = array<i32: 2, 1>} : memref<280x64xf32, #tpu.memory_space<vmem>>, vector<136x64xf32>
    %c3 = arith.constant 3 : index
    %c0_14 = arith.constant 0 : index
    %15 = tpu.strided_load %arg11[%c3, %c0_14] {strides = array<i32: 2, 1>} : memref<280x64xf32, #tpu.memory_space<vmem>>, vector<136x64xf32>
    %16 = arith.maximumf %14, %15 : vector<136x64xf32>
    %c4 = arith.constant 4 : index
    %c0_15 = arith.constant 0 : index
    %17 = tpu.strided_load %arg11[%c4, %c0_15] {strides = array<i32: 2, 1>} : memref<280x64xf32, #tpu.memory_space<vmem>>, vector<136x64xf32>
    %c5 = arith.constant 5 : index
    %c0_16 = arith.constant 0 : index
    %18 = tpu.strided_load %arg11[%c5, %c0_16] {strides = array<i32: 2, 1>} : memref<280x64xf32, #tpu.memory_space<vmem>>, vector<136x64xf32>
    %19 = arith.maximumf %17, %18 : vector<136x64xf32>
    %20 = tpu.concatenate %13, %16, %19 in 1 : vector<136x64xf32>, vector<136x64xf32>, vector<136x64xf32> -> vector<136x192xf32>
    %c0_17 = arith.constant 0 : index
    %c0_18 = arith.constant 0 : index
    %21 = vector.load %arg4[%c0_17, %c0_18] : memref<192x64xf32, #tpu.memory_space<vmem>>, vector<192x64xf32>
    %cst_19 = arith.constant dense<0.000000e+00> : vector<136x64xf32>
    %22 = tpu.matmul %20, %21, %cst_19 {dimension_numbers = #tpu.dot_dimension_numbers<[1], [0], [0], [1], [0, 0, 1, 1], [], []>} : vector<136x192xf32>, vector<192x64xf32>, vector<136x64xf32> -> vector<136x64xf32>
    %c0_20 = arith.constant 0 : index
    %c0_21 = arith.constant 0 : index
    %23 = vector.load %arg5[%c0_20, %c0_21] : memref<1x64xf32, #tpu.memory_space<vmem>>, vector<1x64xf32>
    %24 = vector.broadcast %23 : vector<1x64xf32> to vector<136x64xf32>
    %25 = arith.addf %22, %24 : vector<136x64xf32>
    %cst_22 = arith.constant 0.000000e+00 : f32
    %26 = vector.broadcast %cst_22 : f32 to vector<136x64xf32>
    %27 = arith.maximumf %25, %26 : vector<136x64xf32>
    %c0_23 = arith.constant 0 : index
    %c0_24 = arith.constant 0 : index
    %28 = vector.load %arg12[%c0_23, %c0_24] : memref<144x64xf32, #tpu.memory_space<vmem>>, vector<136x64xf32>
    tpu.vector_store %arg12[%c0_23, %c0_24], %27 {strides = array<i32>} : memref<144x64xf32, #tpu.memory_space<vmem>>, vector<136x64xf32>,
    %cst_25 = arith.constant 0.000000e+00 : f32
    %29 = vector.broadcast %cst_25 : f32 to vector<8x64xf32>
    %c136 = arith.constant 136 : index
    %c0_26 = arith.constant 0 : index
    %30 = vector.load %arg12[%c136, %c0_26] : memref<144x64xf32, #tpu.memory_space<vmem>>, vector<8x64xf32>
    tpu.vector_store %arg12[%c136, %c0_26], %29 {strides = array<i32>} : memref<144x64xf32, #tpu.memory_space<vmem>>, vector<8x64xf32>,
    %c0_27 = arith.constant 0 : index
    %c0_28 = arith.constant 0 : index
    %31 = tpu.strided_load %arg12[%c0_27, %c0_28] {strides = array<i32: 2, 1>} : memref<144x64xf32, #tpu.memory_space<vmem>>, vector<68x64xf32>
    %c1_29 = arith.constant 1 : index
    %c0_30 = arith.constant 0 : index
    %32 = tpu.strided_load %arg12[%c1_29, %c0_30] {strides = array<i32: 2, 1>} : memref<144x64xf32, #tpu.memory_space<vmem>>, vector<68x64xf32>
    %33 = arith.maximumf %31, %32 : vector<68x64xf32>
    %c2_31 = arith.constant 2 : index
    %c0_32 = arith.constant 0 : index
    %34 = tpu.strided_load %arg12[%c2_31, %c0_32] {strides = array<i32: 2, 1>} : memref<144x64xf32, #tpu.memory_space<vmem>>, vector<68x64xf32>
    %c3_33 = arith.constant 3 : index
    %c0_34 = arith.constant 0 : index
    %35 = tpu.strided_load %arg12[%c3_33, %c0_34] {strides = array<i32: 2, 1>} : memref<144x64xf32, #tpu.memory_space<vmem>>, vector<68x64xf32>
    %36 = arith.maximumf %34, %35 : vector<68x64xf32>
    %c4_35 = arith.constant 4 : index
    %c0_36 = arith.constant 0 : index
    %37 = tpu.strided_load %arg12[%c4_35, %c0_36] {strides = array<i32: 2, 1>} : memref<144x64xf32, #tpu.memory_space<vmem>>, vector<68x64xf32>
    %c5_37 = arith.constant 5 : index
    %c0_38 = arith.constant 0 : index
    %38 = tpu.strided_load %arg12[%c5_37, %c0_38] {strides = array<i32: 2, 1>} : memref<144x64xf32, #tpu.memory_space<vmem>>, vector<68x64xf32>
    %39 = arith.maximumf %37, %38 : vector<68x64xf32>
    %40 = tpu.concatenate %33, %36, %39 in 1 : vector<68x64xf32>, vector<68x64xf32>, vector<68x64xf32> -> vector<68x192xf32>
    %c0_39 = arith.constant 0 : index
    %c0_40 = arith.constant 0 : index
    %41 = vector.load %arg6[%c0_39, %c0_40] : memref<192x32xf32, #tpu.memory_space<vmem>>, vector<192x32xf32>
    %cst_41 = arith.constant dense<0.000000e+00> : vector<68x32xf32>
    %42 = tpu.matmul %40, %41, %cst_41 {dimension_numbers = #tpu.dot_dimension_numbers<[1], [0], [0], [1], [0, 0, 1, 1], [], []>} : vector<68x192xf32>, vector<192x32xf32>, vector<68x32xf32> -> vector<68x32xf32>
    %c0_42 = arith.constant 0 : index
    %c0_43 = arith.constant 0 : index
    %43 = vector.load %arg7[%c0_42, %c0_43] : memref<1x32xf32, #tpu.memory_space<vmem>>, vector<1x32xf32>
    %44 = vector.broadcast %43 : vector<1x32xf32> to vector<68x32xf32>
    %45 = arith.addf %42, %44 : vector<68x32xf32>
    %cst_44 = arith.constant 0.000000e+00 : f32
    %46 = vector.broadcast %cst_44 : f32 to vector<68x32xf32>
    %47 = arith.maximumf %45, %46 : vector<68x32xf32>
    %c0_45 = arith.constant 0 : index
    %c0_46 = arith.constant 0 : index
    %48 = vector.load %arg13[%c0_45, %c0_46] : memref<68x32xf32, #tpu.memory_space<vmem>>, vector<68x32xf32>
    tpu.vector_store %arg13[%c0_45, %c0_46], %47 {strides = array<i32>} : memref<68x32xf32, #tpu.memory_space<vmem>>, vector<68x32xf32>,
    %c0_47 = arith.constant 0 : index
    %c0_48 = arith.constant 0 : index
    %49 = tpu.strided_load %arg13[%c0_47, %c0_48] {strides = array<i32: 2, 1>} : memref<68x32xf32, #tpu.memory_space<vmem>>, vector<34x32xf32>
    %c1_49 = arith.constant 1 : index
    %c0_50 = arith.constant 0 : index
    %50 = tpu.strided_load %arg13[%c1_49, %c0_50] {strides = array<i32: 2, 1>} : memref<68x32xf32, #tpu.memory_space<vmem>>, vector<34x32xf32>
    %51 = arith.maximumf %49, %50 : vector<34x32xf32>
    %c0_51 = arith.constant 0 : index
    %c0_52 = arith.constant 0 : index
    %52 = vector.load %arg8[%c0_51, %c0_52] : memref<8x34xf32, #tpu.memory_space<vmem>>, vector<8x34xf32>
    %cst_53 = arith.constant dense<0.000000e+00> : vector<8x32xf32>
    %53 = tpu.matmul %52, %51, %cst_53 {dimension_numbers = #tpu.dot_dimension_numbers<[1], [0], [0], [1], [0, 0, 1, 1], [], []>} : vector<8x34xf32>, vector<34x32xf32>, vector<8x32xf32> -> vector<8x32xf32>
    %c0_54 = arith.constant 0 : index
    %c0_55 = arith.constant 0 : index
    %54 = vector.load %arg9[%c0_54, %c0_55] : memref<8x1xf32, #tpu.memory_space<vmem>>, vector<8x1xf32>
    %55 = vector.broadcast %54 : vector<8x1xf32> to vector<8x32xf32>
    %56 = arith.addf %53, %55 : vector<8x32xf32>
    %c0_56 = arith.constant 0 : index
    %c0_57 = arith.constant 0 : index
    %c0_58 = arith.constant 0 : index
    %57 = vector.load %arg10[%c0_56, %c0_57, %c0_58] : memref<1x8x32xf32, #tpu.memory_space<vmem>>, vector<1x8x32xf32>
    %58 = vector.shape_cast %57 : vector<1x8x32xf32> to vector<8x32xf32>
    %59 = vector.shape_cast %56 : vector<8x32xf32> to vector<1x8x32xf32>
    tpu.vector_store %arg10[%c0_56, %c0_57, %c0_58], %59 {strides = array<i32>} : memref<1x8x32xf32, #tpu.memory_space<vmem>>, vector<1x8x32xf32>,
    return
  }
  func.func @transform_0(%arg0: i32) -> (i32, i32) {
    %c0_i32 = arith.constant 0 : i32
    %c0_i32_0 = arith.constant 0 : i32
    return %arg0, %c0_i32 : i32, i32
  }
  func.func @transform_1(%arg0: i32) -> (i32, i32) {
    %c0_i32 = arith.constant 0 : i32
    %c0_i32_0 = arith.constant 0 : i32
    %c0_i32_1 = arith.constant 0 : i32
    return %c0_i32, %c0_i32_0 : i32, i32
  }
  func.func @transform_2(%arg0: i32) -> (i32, i32) {
    %c0_i32 = arith.constant 0 : i32
    %c0_i32_0 = arith.constant 0 : i32
    %c0_i32_1 = arith.constant 0 : i32
    return %c0_i32, %c0_i32_0 : i32, i32
  }
  func.func @transform_3(%arg0: i32) -> (i32, i32) {
    %c0_i32 = arith.constant 0 : i32
    %c0_i32_0 = arith.constant 0 : i32
    %c0_i32_1 = arith.constant 0 : i32
    return %c0_i32, %c0_i32_0 : i32, i32
  }
  func.func @transform_4(%arg0: i32) -> (i32, i32) {
    %c0_i32 = arith.constant 0 : i32
    %c0_i32_0 = arith.constant 0 : i32
    %c0_i32_1 = arith.constant 0 : i32
    return %c0_i32, %c0_i32_0 : i32, i32
  }
  func.func @transform_5(%arg0: i32) -> (i32, i32) {
    %c0_i32 = arith.constant 0 : i32
    %c0_i32_0 = arith.constant 0 : i32
    %c0_i32_1 = arith.constant 0 : i32
    return %c0_i32, %c0_i32_0 : i32, i32
  }
  func.func @transform_6(%arg0: i32) -> (i32, i32) {
    %c0_i32 = arith.constant 0 : i32
    %c0_i32_0 = arith.constant 0 : i32
    %c0_i32_1 = arith.constant 0 : i32
    return %c0_i32, %c0_i32_0 : i32, i32
  }
  func.func @transform_7(%arg0: i32) -> (i32, i32) {
    %c0_i32 = arith.constant 0 : i32
    %c0_i32_0 = arith.constant 0 : i32
    %c0_i32_1 = arith.constant 0 : i32
    return %c0_i32, %c0_i32_0 : i32, i32
  }
  func.func @transform_8(%arg0: i32) -> (i32, i32) {
    %c0_i32 = arith.constant 0 : i32
    %c0_i32_0 = arith.constant 0 : i32
    %c0_i32_1 = arith.constant 0 : i32
    return %c0_i32, %c0_i32_0 : i32, i32
  }
  func.func @transform_9(%arg0: i32) -> (i32, i32, i32) {
    %c0_i32 = arith.constant 0 : i32
    %c0_i32_0 = arith.constant 0 : i32
    %c0_i32_1 = arith.constant 0 : i32
    return %arg0, %c0_i32, %c0_i32_0 : i32, i32, i32
  }
}

</mosaic_0001>

<llo_original>
// kernel: tpu_custom_call.1
$region0: #{tpu_custom_call.1}
  #allocation0 [shape = 'u32[]', space=smem, size = 0x4, offset = 0x4, fixed_abs, tag = 'smem constant byte address 0x4 - core index']
  #allocation1 [shape = 'u32[144,128]{1,0:T(1,128)}', space=vmem, size = 0x12000, scoped, tag = 'internal scratch']
  #allocation2 [shape = 'f32[280,64]{1,0:T(8,128)}', space=vmem, size = 0x23000, scoped, tag = 'scratch operand']
  #allocation3 [shape = 'f32[144,64]{1,0:T(8,128)}', space=vmem, size = 0x12000, scoped, tag = 'scratch operand']
  #allocation4 [shape = 'f32[68,32]{1,0:T(8,128)}', space=vmem, size = 0x9000, scoped, tag = 'scratch operand']
  %s0 = inlined_call_operand.vmem [shape: f32[544,12], index: 0, kind: input, shape index: {}]
  %s1 = inlined_call_operand.vmem [shape: f32[12,64], index: 1, kind: input, shape index: {}]
  %s2 = inlined_call_operand.vmem [shape: f32[1,64], index: 2, kind: input, shape index: {}]
  %s3 = inlined_call_operand.vmem [shape: f32[192,64], index: 3, kind: input, shape index: {}]
  %s4 = inlined_call_operand.vmem [shape: f32[1,64], index: 4, kind: input, shape index: {}]
  %s5 = inlined_call_operand.vmem [shape: f32[192,32], index: 5, kind: input, shape index: {}]
  %s6 = inlined_call_operand.vmem [shape: f32[1,32], index: 6, kind: input, shape index: {}]
  %s7 = inlined_call_operand.vmem [shape: f32[8,34], index: 7, kind: input, shape index: {}]
  %s8 = inlined_call_operand.vmem [shape: f32[8,1], index: 8, kind: input, shape index: {}]
  %s9 = inlined_call_operand.hbm [shape: f32[2,8,32], index: 9, kind: output, shape index: {}]
  %s10 = sld [smem:[#allocation0]]
  $region69: #{tpu_custom_call.1} parent=0
    _
  %s12 = ssub.s32 1, %s10
  %s13 = scalar_select 0, %s12, %s10
  $region1: #{tpu_custom_call.1} parent=0
    #allocation5 [shape = 'u8[8192]{0}', space=vmem, size = 0x2000, scoped, tag = 'output window, operand 0']
    #allocation6 [shape = 's32[2]{0}', space=sflag, size = 0x8, scoped, tag = 'scoped memory for tpu_custom_call.1']
    %14 = vsyncpa [#allocation6], 0
    %s15 = scalar_lea.sflag [#allocation6], 1
    %16 = vsyncpa %s15, 0
    loop: start=0, step=1, limit=4
    $region2: #{tpu_custom_call.1} parent=1 // loop_pre_header
      _
    $region3: #{tpu_custom_call.1} parent=1 // loop_header
      %s18 = sphi 0, %s22
      %p19 = scmp.ge.s32.totalorder %s18, 4
      %s28 = sphi 0, %s30
      %s31 = sphi 0, %s28
      %s32 = sphi 0, %s31
      %s48 = sphi 0, %s32
      %s52 = sphi 0, %s52
      %s54 = sphi 0, %s52
      %s55 = sphi 0, %s54
      %s69 = sphi 0, %s55
      %s73 = sphi 0, %s73
      %s75 = sphi 0, %s73
      %s76 = sphi 0, %s75
      %s90 = sphi 0, %s76
      %s94 = sphi 0, %s94
      %s96 = sphi 0, %s94
      %s97 = sphi 0, %s96
      %s111 = sphi 0, %s97
      %s115 = sphi 0, %s115
      %s117 = sphi 0, %s115
      %s118 = sphi 0, %s117
      %s132 = sphi 0, %s118
      %s136 = sphi 0, %s136
      %s138 = sphi 0, %s136
      %s139 = sphi 0, %s138
      %s153 = sphi 0, %s139
      %s157 = sphi 0, %s157
      %s159 = sphi 0, %s157
      %s160 = sphi 0, %s159
      %s174 = sphi 0, %s160
      %s178 = sphi 0, %s178
      %s180 = sphi 0, %s178
      %s181 = sphi 0, %s180
      %s195 = sphi 0, %s181
      %s199 = sphi 0, %s199
      %s201 = sphi 0, %s199
      %s202 = sphi 0, %s201
      %s216 = sphi 0, %s202
      %s222 = sphi 0, %s224
      %s225 = sphi 0, %s222
      %s226 = sphi 0, %s225
      %s242 = sphi 0, %s226
    $region4: #{tpu_custom_call.1} parent=1 // loop_header_branch
      %21 = sbr.rel (%p19) target = $region8
    $region5: #{tpu_custom_call.1} parent=1 // loop_body
      %s23 = ssub.s32 %s18, 1
      %s24 = ssub.s32 %s18, 2
      %s25 = sadd.s32 %s18, 1
      %s26 = ssub.s32 %s18, %s25
      %p27 = scmp.eq.s32.totalorder %s26, 0
      %s29 = sadd.s32 %s28, 1
      %s30 = scalar_select %p27, %s28, %s29
      %p33 = pneg %p27
      %p34 = scmp.eq.s32.totalorder %s18, 1
      %p35 = por %p33, %p34
      %p36 = scmp.ne.s32.totalorder %s28, %s31
      %p37 = scmp.eq.s32.totalorder %s18, 0
      %p38 = por %p36, %p37
      %p39 = scmp.ne.s32.totalorder %s28, %s31
      %p40 = scmp.eq.s32.totalorder %s23, 1
      %p41 = por %p39, %p40
      %p42 = scmp.ne.s32.totalorder %s31, %s32
      %p43 = scmp.eq.s32.totalorder %s23, 0
      %p44 = por %p42, %p43
      %p45 = scmp.ne.s32.totalorder %s31, %s32
      %p46 = scmp.eq.s32.totalorder %s24, 1
      %p47 = por %p45, %p46
      %p49 = scmp.ne.s32.totalorder %s32, %s48
      %p50 = scmp.eq.s32.totalorder %s24, 0
      %p51 = por %p49, %p50
      %s53 = sadd.s32 %s52, 1
      %p56 = scmp.eq.s32.totalorder %s18, 1
      %p57 = scmp.ne.s32.totalorder %s52, %s54
      %p58 = scmp.eq.s32.totalorder %s18, 0
      %p59 = por %p57, %p58
      %p60 = scmp.ne.s32.totalorder %s52, %s54
      %p61 = scmp.eq.s32.totalorder %s23, 1
      %p62 = por %p60, %p61
      %p63 = scmp.ne.s32.totalorder %s54, %s55
      %p64 = scmp.eq.s32.totalorder %s23, 0
      %p65 = por %p63, %p64
      %p66 = scmp.ne.s32.totalorder %s54, %s55
      %p67 = scmp.eq.s32.totalorder %s24, 1
      %p68 = por %p66, %p67
      %p70 = scmp.ne.s32.totalorder %s55, %s69
      %p71 = scmp.eq.s32.totalorder %s24, 0
      %p72 = por %p70, %p71
      %s74 = sadd.s32 %s73, 1
      %p77 = scmp.eq.s32.totalorder %s18, 1
      %p78 = scmp.ne.s32.totalorder %s73, %s75
      %p79 = scmp.eq.s32.totalorder %s18, 0
      %p80 = por %p78, %p79
      %p81 = scmp.ne.s32.totalorder %s73, %s75
      %p82 = scmp.eq.s32.totalorder %s23, 1
      %p83 = por %p81, %p82
      %p84 = scmp.ne.s32.totalorder %s75, %s76
      %p85 = scmp.eq.s32.totalorder %s23, 0
      %p86 = por %p84, %p85
      %p87 = scmp.ne.s32.totalorder %s75, %s76
      %p88 = scmp.eq.s32.totalorder %s24, 1
      %p89 = por %p87, %p88
      %p91 = scmp.ne.s32.totalorder %s76, %s90
      %p92 = scmp.eq.s32.totalorder %s24, 0
      %p93 = por %p91, %p92
      %s95 = sadd.s32 %s94, 1
      %p98 = scmp.eq.s32.totalorder %s18, 1
      %p99 = scmp.ne.s32.totalorder %s94, %s96
      %p100 = scmp.eq.s32.totalorder %s18, 0
      %p101 = por %p99, %p100
      %p102 = scmp.ne.s32.totalorder %s94, %s96
      %p103 = scmp.eq.s32.totalorder %s23, 1
      %p104 = por %p102, %p103
      %p105 = scmp.ne.s32.totalorder %s96, %s97
      %p106 = scmp.eq.s32.totalorder %s23, 0
      %p107 = por %p105, %p106
      %p108 = scmp.ne.s32.totalorder %s96, %s97
      %p109 = scmp.eq.s32.totalorder %s24, 1
      %p110 = por %p108, %p109
      %p112 = scmp.ne.s32.totalorder %s97, %s111
      %p113 = scmp.eq.s32.totalorder %s24, 0
      %p114 = por %p112, %p113
      %s116 = sadd.s32 %s115, 1
      %p119 = scmp.eq.s32.totalorder %s18, 1
      %p120 = scmp.ne.s32.totalorder %s115, %s117
      %p121 = scmp.eq.s32.totalorder %s18, 0
      %p122 = por %p120, %p121
      %p123 = scmp.ne.s32.totalorder %s115, %s117
      %p124 = scmp.eq.s32.totalorder %s23, 1
      %p125 = por %p123, %p124
      %p126 = scmp.ne.s32.totalorder %s117, %s118
      %p127 = scmp.eq.s32.totalorder %s23, 0
      %p128 = por %p126, %p127
      %p129 = scmp.ne.s32.totalorder %s117, %s118
      %p130 = scmp.eq.s32.totalorder %s24, 1
      %p131 = por %p129, %p130
      %p133 = scmp.ne.s32.totalorder %s118, %s132
      %p134 = scmp.eq.s32.totalorder %s24, 0
      %p135 = por %p133, %p134
      %s137 = sadd.s32 %s136, 1
      %p140 = scmp.eq.s32.totalorder %s18, 1
      %p141 = scmp.ne.s32.totalorder %s136, %s138
      %p142 = scmp.eq.s32.totalorder %s18, 0
      %p143 = por %p141, %p142
      %p144 = scmp.ne.s32.totalorder %s136, %s138
      %p145 = scmp.eq.s32.totalorder %s23, 1
      %p146 = por %p144, %p145
      %p147 = scmp.ne.s32.totalorder %s138, %s139
      %p148 = scmp.eq.s32.totalorder %s23, 0
      %p149 = por %p147, %p148
      %p150 = scmp.ne.s32.totalorder %s138, %s139
      %p151 = scmp.eq.s32.totalorder %s24, 1
      %p152 = por %p150, %p151
      %p154 = scmp.ne.s32.totalorder %s139, %s153
      %p155 = scmp.eq.s32.totalorder %s24, 0
      %p156 = por %p154, %p155
      %s158 = sadd.s32 %s157, 1
      %p161 = scmp.eq.s32.totalorder %s18, 1
      %p162 = scmp.ne.s32.totalorder %s157, %s159
      %p163 = scmp.eq.s32.totalorder %s18, 0
      %p164 = por %p162, %p163
      %p165 = scmp.ne.s32.totalorder %s157, %s159
      %p166 = scmp.eq.s32.totalorder %s23, 1
      %p167 = por %p165, %p166
      %p168 = scmp.ne.s32.totalorder %s159, %s160
      %p169 = scmp.eq.s32.totalorder %s23, 0
      %p170 = por %p168, %p169
      %p171 = scmp.ne.s32.totalorder %s159, %s160
      %p172 = scmp.eq.s32.totalorder %s24, 1
      %p173 = por %p171, %p172
      %p175 = scmp.ne.s32.totalorder %s160, %s174
      %p176 = scmp.eq.s32.totalorder %s24, 0
      %p177 = por %p175, %p176
      %s179 = sadd.s32 %s178, 1
      %p182 = scmp.eq.s32.totalorder %s18, 1
      %p183 = scmp.ne.s32.totalorder %s178, %s180
      %p184 = scmp.eq.s32.totalorder %s18, 0
      %p185 = por %p183, %p184
      %p186 = scmp.ne.s32.totalorder %s178, %s180
      %p187 = scmp.eq.s32.totalorder %s23, 1
      %p188 = por %p186, %p187
      %p189 = scmp.ne.s32.totalorder %s180, %s181
      %p190 = scmp.eq.s32.totalorder %s23, 0
      %p191 = por %p189, %p190
      %p192 = scmp.ne.s32.totalorder %s180, %s181
      %p193 = scmp.eq.s32.totalorder %s24, 1
      %p194 = por %p192, %p193
      %p196 = scmp.ne.s32.totalorder %s181, %s195
      %p197 = scmp.eq.s32.totalorder %s24, 0
      %p198 = por %p196, %p197
      %s200 = sadd.s32 %s199, 1
      %p203 = scmp.eq.s32.totalorder %s18, 1
      %p204 = scmp.ne.s32.totalorder %s199, %s201
      %p205 = scmp.eq.s32.totalorder %s18, 0
      %p206 = por %p204, %p205
      %p207 = scmp.ne.s32.totalorder %s199, %s201
      %p208 = scmp.eq.s32.totalorder %s23, 1
      %p209 = por %p207, %p208
      %p210 = scmp.ne.s32.totalorder %s201, %s202
      %p211 = scmp.eq.s32.totalorder %s23, 0
      %p212 = por %p210, %p211
      %p213 = scmp.ne.s32.totalorder %s201, %s202
      %p214 = scmp.eq.s32.totalorder %s24, 1
      %p215 = por %p213, %p214
      %p217 = scmp.ne.s32.totalorder %s202, %s216
      %p218 = scmp.eq.s32.totalorder %s24, 0
      %p219 = por %p217, %p218
      %s220 = ssub.s32 %s18, %s25
      %p221 = scmp.eq.s32.totalorder %s220, 0
      %s223 = sadd.s32 %s222, 1
      %s224 = scalar_select %p221, %s222, %s223
      %p227 = pneg %p221
      %p228 = scmp.eq.s32.totalorder %s18, 1
      %p229 = por %p227, %p228
      %p230 = scmp.ne.s32.totalorder %s222, %s225
      %p231 = scmp.eq.s32.totalorder %s18, 0
      %p232 = por %p230, %p231
      %p233 = scmp.ne.s32.totalorder %s222, %s225
      %p234 = scmp.eq.s32.totalorder %s23, 1
      %p235 = por %p233, %p234
      %p236 = scmp.ne.s32.totalorder %s225, %s226
      %p237 = scmp.eq.s32.totalorder %s23, 0
      %p238 = por %p236, %p237
      %p239 = scmp.ne.s32.totalorder %s225, %s226
      %p240 = scmp.eq.s32.totalorder %s24, 1
      %p241 = por %p239, %p240
      %p243 = scmp.ne.s32.totalorder %s226, %s242
      %p244 = scmp.eq.s32.totalorder %s24, 0
      %p245 = por %p243, %p244
      %p246 = scmp.le.s32.totalorder 1, %s18
      %p247 = scmp.lt.s32.totalorder %s18, 3
      %p248 = pnand %p246, %p247
      %p249 = pneg %p248
      // Predicated region
      $region9: #{tpu_custom_call.1} parent=5 // pred_check
        _
      $region10: #{tpu_custom_call.1} parent=5 // pred_check_branch
        %251 = sbr.rel (%p248) target = $region12
      $region11: #{tpu_custom_call.1} parent=5 // pred_region
        %s252 = ssub.s32 %s18, 1
        // Predicated region
        $region13: #{tpu_custom_call.1} parent=11 // pred_check
          %p253 = pneg %p65
        $region14: #{tpu_custom_call.1} parent=11 // pred_check_branch
          %255 = sbr.rel (%p253) target = $region16
        $region15: #{tpu_custom_call.1} parent=11 // pred_region
          _
        $region16: #{tpu_custom_call.1} parent=11 // pred_fallthru
          _
        // Predicated region
        $region17: #{tpu_custom_call.1} parent=11 // pred_check
          %p256 = pneg %p86
        $region18: #{tpu_custom_call.1} parent=11 // pred_check_branch
          %258 = sbr.rel (%p256) target = $region20
        $region19: #{tpu_custom_call.1} parent=11 // pred_region
          _
        $region20: #{tpu_custom_call.1} parent=11 // pred_fallthru
          _
        // Predicated region
        $region21: #{tpu_custom_call.1} parent=11 // pred_check
          %p259 = pneg %p107
        $region22: #{tpu_custom_call.1} parent=11 // pred_check_branch
          %261 = sbr.rel (%p259) target = $region24
        $region23: #{tpu_custom_call.1} parent=11 // pred_region
          _
        $region24: #{tpu_custom_call.1} parent=11 // pred_fallthru
          _
        // Predicated region
        $region25: #{tpu_custom_call.1} parent=11 // pred_check
          %p262 = pneg %p128
        $region26: #{tpu_custom_call.1} parent=11 // pred_check_branch
          %264 = sbr.rel (%p262) target = $region28
        $region27: #{tpu_custom_call.1} parent=11 // pred_region
          _
        $region28: #{tpu_custom_call.1} parent=11 // pred_fallthru
          _
        // Predicated region
        $region29: #{tpu_custom_call.1} parent=11 // pred_check
          %p265 = pneg %p149
        $region30: #{tpu_custom_call.1} parent=11 // pred_check_branch
          %267 = sbr.rel (%p265) target = $region32
        $region31: #{tpu_custom_call.1} parent=11 // pred_region
          _
        $region32: #{tpu_custom_call.1} parent=11 // pred_fallthru
          _
        // Predicated region
        $region33: #{tpu_custom_call.1} parent=11 // pred_check
          %p268 = pneg %p170
        $region34: #{tpu_custom_call.1} parent=11 // pred_check_branch
          %270 = sbr.rel (%p268) target = $region36
        $region35: #{tpu_custom_call.1} parent=11 // pred_region
          _
        $region36: #{tpu_custom_call.1} parent=11 // pred_fallthru
          _
        // Predicated region
        $region37: #{tpu_custom_call.1} parent=11 // pred_check
          %p271 = pneg %p191
        $region38: #{tpu_custom_call.1} parent=11 // pred_check_branch
          %273 = sbr.rel (%p271) target = $region40
        $region39: #{tpu_custom_call.1} parent=11 // pred_region
          _
        $region40: #{tpu_custom_call.1} parent=11 // pred_fallthru
          _
        // Predicated region
        $region41: #{tpu_custom_call.1} parent=11 // pred_check
          %p274 = pneg %p212
        $region42: #{tpu_custom_call.1} parent=11 // pred_check_branch
          %276 = sbr.rel (%p274) target = $region44
        $region43: #{tpu_custom_call.1} parent=11 // pred_region
          _
        $region44: #{tpu_custom_call.1} parent=11 // pred_fallthru
          _
      $region12: #{tpu_custom_call.1} parent=5 // pred_fallthru
        _
      %p277 = scmp.lt.s32.totalorder %s18, 2
      // Predicated region
      $region45: #{tpu_custom_call.1} parent=5 // pred_check
        %p278 = pneg %p277
      $region46: #{tpu_custom_call.1} parent=5 // pred_check_branch
        %280 = sbr.rel (%p278) target = $region48
      $region47: #{tpu_custom_call.1} parent=5 // pred_region
        // Predicated region
        $region49: #{tpu_custom_call.1} parent=47 // pred_check
          %p281 = pneg %p38
        $region50: #{tpu_custom_call.1} parent=47 // pred_check_branch
          %283 = sbr.rel (%p281) target = $region52
        $region51: #{tpu_custom_call.1} parent=47 // pred_region
          %s284 = smul.u32 34, %s18
          %p285 = scmp.lt.s32.totalorder %s284, 67
          %s286 = scalar_select %p285, %s284, 67
          %s287 = smul.addr %s286, 8
          %s288 = scalar_lea.vmem %s0, %s287
          %s289 = smul.u32 34, %s18
        $region52: #{tpu_custom_call.1} parent=47 // pred_fallthru
          _
      $region48: #{tpu_custom_call.1} parent=5 // pred_fallthru
        _
      %p290 = scmp.le.s32.totalorder 1, %s18
      %p291 = scmp.lt.s32.totalorder %s18, 3
      %p292 = pnand %p290, %p291
      %p293 = pneg %p292
      // Predicated region
      $region53: #{tpu_custom_call.1} parent=5 // pred_check
        _
      $region54: #{tpu_custom_call.1} parent=5 // pred_check_branch
        %295 = sbr.rel (%p292) target = $region56
      $region55: #{tpu_custom_call.1} parent=5 // pred_region
        %s296 = ssub.s32 %s18, 1
        %s297 = smul.u32 34, %s23
        %p298 = scmp.lt.s32.totalorder %s297, 67
        %s299 = scalar_select %p298, %s297, 67
        %s300 = smul.addr %s299, 8
        %s301 = scalar_lea.vmem %s0, %s300
        %p302 = pneg %p44
        %p303 = pneg %p41
        %p304 = pneg %p65
        %p305 = pneg %p62
        %p306 = pneg %p86
        %p307 = pneg %p83
        %p308 = pneg %p107
        %p309 = pneg %p104
        %p310 = pneg %p128
        %p311 = pneg %p125
        %p312 = pneg %p149
        %p313 = pneg %p146
        %p314 = pneg %p170
        %p315 = pneg %p167
        %p316 = pneg %p191
        %p317 = pneg %p188
        %p318 = pneg %p212
        %p319 = pneg %p209
        %p320 = pneg %p238
        %p321 = pneg %p235
        %s322 = sand.u32 %s225, 1
        %s323 = scalar_lea.sflag [#allocation6], %s322
        %s324 = sand.u32 %s225, 1
        %s325 = smul.addr %s324, 8
        %s326 = scalar_lea.vmem [#allocation5], %s325
        %s327 = smul.u32 34, %s23
        %p328 = scmp.lt.s32.totalorder %s327, 67
        %s329 = scalar_select %p328, %s327, 67
        %s330 = smul.addr %s329, 8
        %s331 = scalar_lea.vmem %s0, %s330
        %s332 = smul.u32 34, %s23
        %v333 = vld [vmem:[%s331] sm:$0xff]
        %v334 = vld [vmem:[%s331 + $0x8] sm:$0xff]
        %v335 = vld [vmem:[%s331 + $0x10] sm:$0xff]
        %v336 = vld [vmem:[%s331 + $0x18] sm:$0xff]
        %v337 = vld [vmem:[%s331 + $0x20] sm:$0xff]
        %v338 = vld [vmem:[%s331 + $0x28] sm:$0xff]
        %v339 = vld [vmem:[%s331 + $0x30] sm:$0xff]
        %v340 = vld [vmem:[%s331 + $0x38] sm:$0xff]
        %v341 = vld [vmem:[%s331 + $0x40] sm:$0xff]
        %v342 = vld [vmem:[%s331 + $0x48] sm:$0xff]
        %v343 = vld [vmem:[%s331 + $0x50] sm:$0xff]
        %v344 = vld [vmem:[%s331 + $0x58] sm:$0xff]
        %v345 = vld [vmem:[%s331 + $0x60] sm:$0xff]
        %v346 = vld [vmem:[%s331 + $0x68] sm:$0xff]
        %v347 = vld [vmem:[%s331 + $0x70] sm:$0xff]
        %v348 = vld [vmem:[%s331 + $0x78] sm:$0xff]
        %v349 = vld [vmem:[%s331 + $0x80] sm:$0xff]
        %v350 = vld [vmem:[%s331 + $0x88] sm:$0xff]
        %v351 = vld [vmem:[%s331 + $0x90] sm:$0xff]
        %v352 = vld [vmem:[%s331 + $0x98] sm:$0xff]
        %v353 = vld [vmem:[%s331 + $0xa0] sm:$0xff]
        %v354 = vld [vmem:[%s331 + $0xa8] sm:$0xff]
        %v355 = vld [vmem:[%s331 + $0xb0] sm:$0xff]
        %v356 = vld [vmem:[%s331 + $0xb8] sm:$0xff]
        %v357 = vld [vmem:[%s331 + $0xc0] sm:$0xff]
        %v358 = vld [vmem:[%s331 + $0xc8] sm:$0xff]
        %v359 = vld [vmem:[%s331 + $0xd0] sm:$0xff]
        %v360 = vld [vmem:[%s331 + $0xd8] sm:$0xff]
        %v361 = vld [vmem:[%s331 + $0xe0] sm:$0xff]
        %v362 = vld [vmem:[%s331 + $0xe8] sm:$0xff]
        %v363 = vld [vmem:[%s331 + $0xf0] sm:$0xff]
        %v364 = vld [vmem:[%s331 + $0xf8] sm:$0xff]
        %v365 = vld [vmem:[%s331 + $0x100] sm:$0xff]
        %v366 = vld [vmem:[%s331 + $0x108] sm:$0xff]
        %v367 = vld [vmem:[%s1] sm:$0xff]
        %v368 = vld [vmem:[%s1 + $0x8] sm:$0xf]
        %v369 = vld [vmem:[%s2] sm:$0x1]
        %v371 = vlaneseq
        %v372 = vshrl.u32 %v371, 7
        %v373 = vsub.s32 0, %v372
        %v374 = vrot.slane %v369, %v373
        %vm376 = vcmask 97280
        %v378 = vsel %vm376, %v333, 0
        %v381 = vsel %vm376, %v334, 0
        %v384 = vsel %vm376, %v335, 0
        %v387 = vsel %vm376, %v336, 0
        %v390 = vsel %vm376, %v337, 0
        %v393 = vsel %vm376, %v338, 0
        %v396 = vsel %vm376, %v339, 0
        %v399 = vsel %vm376, %v340, 0
        %v402 = vsel %vm376, %v341, 0
        %v405 = vsel %vm376, %v342, 0
        %v408 = vsel %vm376, %v343, 0
        %v411 = vsel %vm376, %v344, 0
        %v414 = vsel %vm376, %v345, 0
        %v417 = vsel %vm376, %v346, 0
        %v420 = vsel %vm376, %v347, 0
        %v423 = vsel %vm376, %v348, 0
        %v426 = vsel %vm376, %v349, 0
        %v429 = vsel %vm376, %v350, 0
        %v432 = vsel %vm376, %v351, 0
        %v435 = vsel %vm376, %v352, 0
        %v438 = vsel %vm376, %v353, 0
        %v441 = vsel %vm376, %v354, 0
        %v444 = vsel %vm376, %v355, 0
        %v447 = vsel %vm376, %v356, 0
        %v450 = vsel %vm376, %v357, 0
        %v453 = vsel %vm376, %v358, 0
        %v456 = vsel %vm376, %v359, 0
        %v459 = vsel %vm376, %v360, 0
        %v462 = vsel %vm376, %v361, 0
        %v465 = vsel %vm376, %v362, 0
        %v468 = vsel %vm376, %v363, 0
        %v471 = vsel %vm376, %v364, 0
        %v474 = vsel %vm376, %v365, 0
        %v477 = vsel %vm376, %v366, 0
        %vm479 = vcmask 1043456
        %v481 = vsel %vm479, %v368, 0
        %483 = vmatprep.subr.mxu0 0.0
        %484 = vmatpush1.msra.mxu0 %v367
        %485 = vmatprep.subr.mxu0 0.0
        %486 = vmatpush1.msra.mxu0 %v481
        %487 = vmatprep.subr.mxu0 0.0
        %488 = vmatpush1.msra.mxu0 0.0
        %489 = vmatprep.subr.mxu0 0.0
        %490 = vmatpush1.msra.mxu0 0.0
        %491 = vmatprep.subr.mxu0 0.0
        %492 = vmatpush1.msra.mxu0 0.0
        %493 = vmatprep.subr.mxu0 0.0
        %494 = vmatpush1.msra.mxu0 0.0
        %495 = vmatprep.subr.mxu0 0.0
        %496 = vmatpush1.msra.mxu0 0.0
        %497 = vmatprep.subr.mxu0 0.0
        %498 = vmatpush1.msra.mxu0 0.0
        %499 = vmatprep.subr.mxu0 0.0
        %500 = vmatpush1.msra.mxu0 0.0
        %501 = vmatprep.subr.mxu0 0.0
        %502 = vmatpush1.msra.mxu0 0.0
        %503 = vmatprep.subr.mxu0 0.0
        %504 = vmatpush1.msra.mxu0 0.0
        %505 = vmatprep.subr.mxu0 0.0
        %506 = vmatpush1.msra.mxu0 0.0
        %507 = vmatprep.subr.mxu0 0.0
        %508 = vmatpush1.msra.mxu0 0.0
        %509 = vmatprep.subr.mxu0 0.0
        %510 = vmatpush1.msra.mxu0 0.0
        %511 = vmatprep.subr.mxu0 0.0
        %512 = vmatpush1.msra.mxu0 0.0
        %513 = vmatprep.subr.mxu0 0.0
        %514 = vmatpush1.msra.mxu0 0.0
        %515 = vmatprep.subr.mxu0 0.0
        %516 = vmatpush1.msra.mxu0 0.0
        %517 = vmatprep.subr.mxu0 0.0
        %518 = vmatpush1.msra.mxu0 0.0
        %519 = vmatprep.subr.mxu0 0.0
        %520 = vmatpush1.msra.mxu0 0.0
        %521 = vmatprep.subr.mxu0 0.0
        %522 = vmatpush1.msra.mxu0 0.0
        %523 = vmatprep.subr.mxu0 0.0
        %524 = vmatpush1.msra.mxu0 0.0
        %525 = vmatprep.subr.mxu0 0.0
        %526 = vmatpush1.msra.mxu0 0.0
        %527 = vmatprep.subr.mxu0 0.0
        %528 = vmatpush1.msra.mxu0 0.0
        %529 = vmatprep.subr.mxu0 0.0
        %530 = vmatpush1.msra.mxu0 0.0
        %531 = vmatprep.subr.mxu0 0.0
        %532 = vmatpush1.msra.mxu0 0.0
        %533 = vmatprep.subr.mxu0 0.0
        %534 = vmatpush1.msra.mxu0 0.0
        %535 = vmatprep.subr.mxu0 0.0
        %536 = vmatpush1.msra.mxu0 0.0
        %537 = vmatprep.subr.mxu0 0.0
        %538 = vmatpush1.msra.mxu0 0.0
        %539 = vmatprep.subr.mxu0 0.0
        %540 = vmatpush1.msra.mxu0 0.0
        %541 = vmatprep.subr.mxu0 0.0
        %542 = vmatpush1.msra.mxu0 0.0
        %543 = vmatprep.subr.mxu0 0.0
        %544 = vmatpush1.msra.mxu0 0.0
        %545 = vmatprep.subr.mxu0 0.0
        %546 = vmatpush1.msra.mxu0 0.0
        %547 = vmatprep.mubr.f32.mxu0 0.0
        %548 = vmatmul.mubr.f32.gmra.mrb[0].mxu0 %v378
        %v549 = vpop.f32.mrb[0].mxu0
        %v550 = vadd.f32 %v374, %v549
        %v551 = vpop.f32.mrb[0].mxu0
        %552 = vmatprep.mubr.f32.mxu0 0.0
        %553 = vmatmul.mubr.f32.gmra.mrb[0].mxu0 %v381
        %v554 = vpop.f32.mrb[0].mxu0
        %v555 = vadd.f32 %v374, %v554
        %v556 = vpop.f32.mrb[0].mxu0
        %557 = vmatprep.mubr.f32.mxu0 0.0
        %558 = vmatmul.mubr.f32.gmra.mrb[0].mxu0 %v384
        %v559 = vpop.f32.mrb[0].mxu0
        %v560 = vadd.f32 %v374, %v559
        %v561 = vpop.f32.mrb[0].mxu0
        %562 = vmatprep.mubr.f32.mxu0 0.0
        %563 = vmatmul.mubr.f32.gmra.mrb[0].mxu0 %v387
        %v564 = vpop.f32.mrb[0].mxu0
        %v565 = vadd.f32 %v374, %v564
        %v566 = vpop.f32.mrb[0].mxu0
        %567 = vmatprep.mubr.f32.mxu0 0.0
        %568 = vmatmul.mubr.f32.gmra.mrb[0].mxu0 %v390
        %v569 = vpop.f32.mrb[0].mxu0
        %v570 = vadd.f32 %v374, %v569
        %v571 = vpop.f32.mrb[0].mxu0
        %572 = vmatprep.mubr.f32.mxu0 0.0
        %573 = vmatmul.mubr.f32.gmra.mrb[0].mxu0 %v393
        %v574 = vpop.f32.mrb[0].mxu0
        %v575 = vadd.f32 %v374, %v574
        %v576 = vpop.f32.mrb[0].mxu0
        %577 = vmatprep.mubr.f32.mxu0 0.0
        %578 = vmatmul.mubr.f32.gmra.mrb[0].mxu0 %v396
        %v579 = vpop.f32.mrb[0].mxu0
        %v580 = vadd.f32 %v374, %v579
        %v581 = vpop.f32.mrb[0].mxu0
        %582 = vmatprep.mubr.f32.mxu0 0.0
        %583 = vmatmul.mubr.f32.gmra.mrb[0].mxu0 %v399
        %v584 = vpop.f32.mrb[0].mxu0
        %v585 = vadd.f32 %v374, %v584
        %v586 = vpop.f32.mrb[0].mxu0
        %587 = vmatprep.mubr.f32.mxu0 0.0
        %588 = vmatmul.mubr.f32.gmra.mrb[0].mxu0 %v402
        %v589 = vpop.f32.mrb[0].mxu0
        %v590 = vadd.f32 %v374, %v589
        %v591 = vpop.f32.mrb[0].mxu0
        %592 = vmatprep.mubr.f32.mxu0 0.0
        %593 = vmatmul.mubr.f32.gmra.mrb[0].mxu0 %v405
        %v594 = vpop.f32.mrb[0].mxu0
        %v595 = vadd.f32 %v374, %v594
        %v596 = vpop.f32.mrb[0].mxu0
        %597 = vmatprep.mubr.f32.mxu0 0.0
        %598 = vmatmul.mubr.f32.gmra.mrb[0].mxu0 %v408
        %v599 = vpop.f32.mrb[0].mxu0
        %v600 = vadd.f32 %v374, %v599
        %v601 = vpop.f32.mrb[0].mxu0
        %602 = vmatprep.mubr.f32.mxu0 0.0
        %603 = vmatmul.mubr.f32.gmra.mrb[0].mxu0 %v411
        %v604 = vpop.f32.mrb[0].mxu0
        %v605 = vadd.f32 %v374, %v604
        %v606 = vpop.f32.mrb[0].mxu0
        %607 = vmatprep.mubr.f32.mxu0 0.0
        %608 = vmatmul.mubr.f32.gmra.mrb[0].mxu0 %v414
        %v609 = vpop.f32.mrb[0].mxu0
        %v610 = vadd.f32 %v374, %v609
        %v611 = vpop.f32.mrb[0].mxu0
        %612 = vmatprep.mubr.f32.mxu0 0.0
        %613 = vmatmul.mubr.f32.gmra.mrb[0].mxu0 %v417
        %v614 = vpop.f32.mrb[0].mxu0
        %v615 = vadd.f32 %v374, %v614
        %v616 = vpop.f32.mrb[0].mxu0
        %617 = vmatprep.mubr.f32.mxu0 0.0
        %618 = vmatmul.mubr.f32.gmra.mrb[0].mxu0 %v420
        %v619 = vpop.f32.mrb[0].mxu0
        %v620 = vadd.f32 %v374, %v619
        %v621 = vpop.f32.mrb[0].mxu0
        %622 = vmatprep.mubr.f32.mxu0 0.0
        %623 = vmatmul.mubr.f32.gmra.mrb[0].mxu0 %v423
        %v624 = vpop.f32.mrb[0].mxu0
        %v625 = vadd.f32 %v374, %v624
        %v626 = vpop.f32.mrb[0].mxu0
        %627 = vmatprep.mubr.f32.mxu0 0.0
        %628 = vmatmul.mubr.f32.gmra.mrb[0].mxu0 %v426
        %v629 = vpop.f32.mrb[0].mxu0
        %v630 = vadd.f32 %v374, %v629
        %v631 = vpop.f32.mrb[0].mxu0
        %632 = vmatprep.mubr.f32.mxu0 0.0
        %633 = vmatmul.mubr.f32.gmra.mrb[0].mxu0 %v429
        %v634 = vpop.f32.mrb[0].mxu0
        %v635 = vadd.f32 %v374, %v634
        %v636 = vpop.f32.mrb[0].mxu0
        %637 = vmatprep.mubr.f32.mxu0 0.0
        %638 = vmatmul.mubr.f32.gmra.mrb[0].mxu0 %v432
        %v639 = vpop.f32.mrb[0].mxu0
        %v640 = vadd.f32 %v374, %v639
        %v641 = vpop.f32.mrb[0].mxu0
        %642 = vmatprep.mubr.f32.mxu0 0.0
        %643 = vmatmul.mubr.f32.gmra.mrb[0].mxu0 %v435
        %v644 = vpop.f32.mrb[0].mxu0
        %v645 = vadd.f32 %v374, %v644
        %v646 = vpop.f32.mrb[0].mxu0
        %647 = vmatprep.mubr.f32.mxu0 0.0
        %648 = vmatmul.mubr.f32.gmra.mrb[0].mxu0 %v438
        %v649 = vpop.f32.mrb[0].mxu0
        %v650 = vadd.f32 %v374, %v649
        %v651 = vpop.f32.mrb[0].mxu0
        %652 = vmatprep.mubr.f32.mxu0 0.0
        %653 = vmatmul.mubr.f32.gmra.mrb[0].mxu0 %v441
        %v654 = vpop.f32.mrb[0].mxu0
        %v655 = vadd.f32 %v374, %v654
        %v656 = vpop.f32.mrb[0].mxu0
        %657 = vmatprep.mubr.f32.mxu0 0.0
        %658 = vmatmul.mubr.f32.gmra.mrb[0].mxu0 %v444
        %v659 = vpop.f32.mrb[0].mxu0
        %v660 = vadd.f32 %v374, %v659
        %v661 = vpop.f32.mrb[0].mxu0
        %662 = vmatprep.mubr.f32.mxu0 0.0
        %663 = vmatmul.mubr.f32.gmra.mrb[0].mxu0 %v447
        %v664 = vpop.f32.mrb[0].mxu0
        %v665 = vadd.f32 %v374, %v664
        %v666 = vpop.f32.mrb[0].mxu0
        %667 = vmatprep.mubr.f32.mxu0 0.0
        %668 = vmatmul.mubr.f32.gmra.mrb[0].mxu0 %v450
        %v669 = vpop.f32.mrb[0].mxu0
        %v670 = vadd.f32 %v374, %v669
        %v671 = vpop.f32.mrb[0].mxu0
        %672 = vmatprep.mubr.f32.mxu0 0.0
        %673 = vmatmul.mubr.f32.gmra.mrb[0].mxu0 %v453
        %v674 = vpop.f32.mrb[0].mxu0
        %v675 = vadd.f32 %v374, %v674
        %v676 = vpop.f32.mrb[0].mxu0
        %677 = vmatprep.mubr.f32.mxu0 0.0
        %678 = vmatmul.mubr.f32.gmra.mrb[0].mxu0 %v456
        %v679 = vpop.f32.mrb[0].mxu0
        %v680 = vadd.f32 %v374, %v679
        %v681 = vpop.f32.mrb[0].mxu0
        %682 = vmatprep.mubr.f32.mxu0 0.0
        %683 = vmatmul.mubr.f32.gmra.mrb[0].mxu0 %v459
        %v684 = vpop.f32.mrb[0].mxu0
        %v685 = vadd.f32 %v374, %v684
        %v686 = vpop.f32.mrb[0].mxu0
        %687 = vmatprep.mubr.f32.mxu0 0.0
        %688 = vmatmul.mubr.f32.gmra.mrb[0].mxu0 %v462
        %v689 = vpop.f32.mrb[0].mxu0
        %v690 = vadd.f32 %v374, %v689
        %v691 = vpop.f32.mrb[0].mxu0
        %692 = vmatprep.mubr.f32.mxu0 0.0
        %693 = vmatmul.mubr.f32.gmra.mrb[0].mxu0 %v465
        %v694 = vpop.f32.mrb[0].mxu0
        %v695 = vadd.f32 %v374, %v694
        %v696 = vpop.f32.mrb[0].mxu0
        %697 = vmatprep.mubr.f32.mxu0 0.0
        %698 = vmatmul.mubr.f32.gmra.mrb[0].mxu0 %v468
        %v699 = vpop.f32.mrb[0].mxu0
        %v700 = vadd.f32 %v374, %v699
        %v701 = vpop.f32.mrb[0].mxu0
        %702 = vmatprep.mubr.f32.mxu0 0.0
        %703 = vmatmul.mubr.f32.gmra.mrb[0].mxu0 %v471
        %v704 = vpop.f32.mrb[0].mxu0
        %v705 = vadd.f32 %v374, %v704
        %v706 = vpop.f32.mrb[0].mxu0
        %707 = vmatprep.mubr.f32.mxu0 0.0
        %708 = vmatmul.mubr.f32.gmra.mrb[0].mxu0 %v474
        %v709 = vpop.f32.mrb[0].mxu0
        %v710 = vadd.f32 %v374, %v709
        %v711 = vpop.f32.mrb[0].mxu0
        %712 = vmatprep.mubr.f32.mxu0 0.0
        %713 = vmatmul.mubr.f32.gmra.mrb[0].mxu0 %v477
        %v714 = vpop.f32.mrb[0].mxu0
        %v715 = vadd.f32 %v374, %v714
        %v716 = vpop.f32.mrb[0].mxu0
        %717 = vdwg.mxu0
        %v718 = vmax.f32 %v550, 0.0
        %v719 = vmax.f32 %v555, 0.0
        %v720 = vmax.f32 %v560, 0.0
        %v721 = vmax.f32 %v565, 0.0
        %v722 = vmax.f32 %v570, 0.0
        %v723 = vmax.f32 %v575, 0.0
        %v724 = vmax.f32 %v580, 0.0
        %v725 = vmax.f32 %v585, 0.0
        %v726 = vmax.f32 %v590, 0.0
        %v727 = vmax.f32 %v595, 0.0
        %v728 = vmax.f32 %v600, 0.0
        %v729 = vmax.f32 %v605, 0.0
        %v730 = vmax.f32 %v610, 0.0
        %v731 = vmax.f32 %v615, 0.0
        %v732 = vmax.f32 %v620, 0.0
        %v733 = vmax.f32 %v625, 0.0
        %v734 = vmax.f32 %v630, 0.0
        %v735 = vmax.f32 %v635, 0.0
        %v736 = vmax.f32 %v640, 0.0
        %v737 = vmax.f32 %v645, 0.0
        %v738 = vmax.f32 %v650, 0.0
        %v739 = vmax.f32 %v655, 0.0
        %v740 = vmax.f32 %v660, 0.0
        %v741 = vmax.f32 %v665, 0.0
        %v742 = vmax.f32 %v670, 0.0
        %v743 = vmax.f32 %v675, 0.0
        %v744 = vmax.f32 %v680, 0.0
        %v745 = vmax.f32 %v685, 0.0
        %v746 = vmax.f32 %v690, 0.0
        %v747 = vmax.f32 %v695, 0.0
        %v748 = vmax.f32 %v700, 0.0
        %v749 = vmax.f32 %v705, 0.0
        %v750 = vmax.f32 %v710, 0.0
        %v751 = vmax.f32 %v715, 0.0
        %vm752 = vcmask 523264
        %753 = vst.msk [vmem:[#allocation2] sm:$0xff] %vm752, %v718
        %754 = vst.msk [vmem:[#allocation2 + $0x8] sm:$0xff] %vm752, %v719
        %755 = vst.msk [vmem:[#allocation2 + $0x10] sm:$0xff] %vm752, %v720
        %756 = vst.msk [vmem:[#allocation2 + $0x18] sm:$0xff] %vm752, %v721
        %757 = vst.msk [vmem:[#allocation2 + $0x20] sm:$0xff] %vm752, %v722
        %758 = vst.msk [vmem:[#allocation2 + $0x28] sm:$0xff] %vm752, %v723
        %759 = vst.msk [vmem:[#allocation2 + $0x30] sm:$0xff] %vm752, %v724
        %760 = vst.msk [vmem:[#allocation2 + $0x38] sm:$0xff] %vm752, %v725
        %761 = vst.msk [vmem:[#allocation2 + $0x40] sm:$0xff] %vm752, %v726
        %762 = vst.msk [vmem:[#allocation2 + $0x48] sm:$0xff] %vm752, %v727
        %763 = vst.msk [vmem:[#allocation2 + $0x50] sm:$0xff] %vm752, %v728
        %764 = vst.msk [vmem:[#allocation2 + $0x58] sm:$0xff] %vm752, %v729
        %765 = vst.msk [vmem:[#allocation2 + $0x60] sm:$0xff] %vm752, %v730
        %766 = vst.msk [vmem:[#allocation2 + $0x68] sm:$0xff] %vm752, %v731
        %767 = vst.msk [vmem:[#allocation2 + $0x70] sm:$0xff] %vm752, %v732
        %768 = vst.msk [vmem:[#allocation2 + $0x78] sm:$0xff] %vm752, %v733
        %769 = vst.msk [vmem:[#allocation2 + $0x80] sm:$0xff] %vm752, %v734
        %770 = vst.msk [vmem:[#allocation2 + $0x88] sm:$0xff] %vm752, %v735
        %771 = vst.msk [vmem:[#allocation2 + $0x90] sm:$0xff] %vm752, %v736
        %772 = vst.msk [vmem:[#allocation2 + $0x98] sm:$0xff] %vm752, %v737
        %773 = vst.msk [vmem:[#allocation2 + $0xa0] sm:$0xff] %vm752, %v738
        %774 = vst.msk [vmem:[#allocation2 + $0xa8] sm:$0xff] %vm752, %v739
        %775 = vst.msk [vmem:[#allocation2 + $0xb0] sm:$0xff] %vm752, %v740
        %776 = vst.msk [vmem:[#allocation2 + $0xb8] sm:$0xff] %vm752, %v741
        %777 = vst.msk [vmem:[#allocation2 + $0xc0] sm:$0xff] %vm752, %v742
        %778 = vst.msk [vmem:[#allocation2 + $0xc8] sm:$0xff] %vm752, %v743
        %779 = vst.msk [vmem:[#allocation2 + $0xd0] sm:$0xff] %vm752, %v744
        %780 = vst.msk [vmem:[#allocation2 + $0xd8] sm:$0xff] %vm752, %v745
        %781 = vst.msk [vmem:[#allocation2 + $0xe0] sm:$0xff] %vm752, %v746
        %782 = vst.msk [vmem:[#allocation2 + $0xe8] sm:$0xff] %vm752, %v747
        %783 = vst.msk [vmem:[#allocation2 + $0xf0] sm:$0xff] %vm752, %v748
        %784 = vst.msk [vmem:[#allocation2 + $0xf8] sm:$0xff] %vm752, %v749
        %785 = vst.msk [vmem:[#allocation2 + $0x100] sm:$0xff] %vm752, %v750
        %786 = vst.msk [vmem:[#allocation2 + $0x108] sm:$0xff] %vm752, %v751
        %787 = vst.msk [vmem:[#allocation2 + $0x110] sm:$0xff] %vm752, 0.0
        %v788 = vld [vmem:[#allocation2] ss:$2 sm:$0xff]
        %s789 = scalar_lea.vmem [#allocation2], 16
        %v790 = vld [vmem:[%s789] ss:$2 sm:$0xff]
        %s791 = scalar_lea.vmem [#allocation2], 32
        %v792 = vld [vmem:[%s791] ss:$2 sm:$0xff]
        %s793 = scalar_lea.vmem [#allocation2], 48
        %v794 = vld [vmem:[%s793] ss:$2 sm:$0xff]
        %s795 = scalar_lea.vmem [#allocation2], 64
        %v796 = vld [vmem:[%s795] ss:$2 sm:$0xff]
        %s797 = scalar_lea.vmem [#allocation2], 80
        %v798 = vld [vmem:[%s797] ss:$2 sm:$0xff]
        %s799 = scalar_lea.vmem [#allocation2], 96
        %v800 = vld [vmem:[%s799] ss:$2 sm:$0xff]
        %s801 = scalar_lea.vmem [#allocation2], 112
        %v802 = vld [vmem:[%s801] ss:$2 sm:$0xff]
        %s803 = scalar_lea.vmem [#allocation2], 128
        %v804 = vld [vmem:[%s803] ss:$2 sm:$0xff]
        %s805 = scalar_lea.vmem [#allocation2], 144
        %v806 = vld [vmem:[%s805] ss:$2 sm:$0xff]
        %s807 = scalar_lea.vmem [#allocation2], 160
        %v808 = vld [vmem:[%s807] ss:$2 sm:$0xff]
        %s809 = scalar_lea.vmem [#allocation2], 176
        %v810 = vld [vmem:[%s809] ss:$2 sm:$0xff]
        %s811 = scalar_lea.vmem [#allocation2], 192
        %v812 = vld [vmem:[%s811] ss:$2 sm:$0xff]
        %s813 = scalar_lea.vmem [#allocation2], 208
        %v814 = vld [vmem:[%s813] ss:$2 sm:$0xff]
        %s815 = scalar_lea.vmem [#allocation2], 224
        %v816 = vld [vmem:[%s815] ss:$2 sm:$0xff]
        %s817 = scalar_lea.vmem [#allocation2], 240
        %v818 = vld [vmem:[%s817] ss:$2 sm:$0xff]
        %s819 = scalar_lea.vmem [#allocation2], 256
        %v820 = vld [vmem:[%s819] ss:$2 sm:$0xff]
        %s821 = scalar_lea.vmem [#allocation2], 1
        %v822 = vld [vmem:[%s821] ss:$2 sm:$0xff]
        %s823 = scalar_lea.vmem [#allocation2], 17
        %v824 = vld [vmem:[%s823] ss:$2 sm:$0xff]
        %s825 = scalar_lea.vmem [#allocation2], 33
        %v826 = vld [vmem:[%s825] ss:$2 sm:$0xff]
        %s827 = scalar_lea.vmem [#allocation2], 49
        %v828 = vld [vmem:[%s827] ss:$2 sm:$0xff]
        %s829 = scalar_lea.vmem [#allocation2], 65
        %v830 = vld [vmem:[%s829] ss:$2 sm:$0xff]
        %s831 = scalar_lea.vmem [#allocation2], 81
        %v832 = vld [vmem:[%s831] ss:$2 sm:$0xff]
        %s833 = scalar_lea.vmem [#allocation2], 97
        %v834 = vld [vmem:[%s833] ss:$2 sm:$0xff]
        %s835 = scalar_lea.vmem [#allocation2], 113
        %v836 = vld [vmem:[%s835] ss:$2 sm:$0xff]
        %s837 = scalar_lea.vmem [#allocation2], 129
        %v838 = vld [vmem:[%s837] ss:$2 sm:$0xff]
        %s839 = scalar_lea.vmem [#allocation2], 145
        %v840 = vld [vmem:[%s839] ss:$2 sm:$0xff]
        %s841 = scalar_lea.vmem [#allocation2], 161
        %v842 = vld [vmem:[%s841] ss:$2 sm:$0xff]
        %s843 = scalar_lea.vmem [#allocation2], 177
        %v844 = vld [vmem:[%s843] ss:$2 sm:$0xff]
        %s845 = scalar_lea.vmem [#allocation2], 193
        %v846 = vld [vmem:[%s845] ss:$2 sm:$0xff]
        %s847 = scalar_lea.vmem [#allocation2], 209
        %v848 = vld [vmem:[%s847] ss:$2 sm:$0xff]
        %s849 = scalar_lea.vmem [#allocation2], 225
        %v850 = vld [vmem:[%s849] ss:$2 sm:$0xff]
        %s851 = scalar_lea.vmem [#allocation2], 241
        %v852 = vld [vmem:[%s851] ss:$2 sm:$0xff]
        %s853 = scalar_lea.vmem [#allocation2], 257
        %v854 = vld [vmem:[%s853] ss:$2 sm:$0xff]
        %v855 = vmax.f32 %v788, %v822
        %v856 = vmax.f32 %v790, %v824
        %v857 = vmax.f32 %v792, %v826
        %v858 = vmax.f32 %v794, %v828
        %v859 = vmax.f32 %v796, %v830
        %v860 = vmax.f32 %v798, %v832
        %v861 = vmax.f32 %v800, %v834
        %v862 = vmax.f32 %v802, %v836
        %v863 = vmax.f32 %v804, %v838
        %v864 = vmax.f32 %v806, %v840
        %v865 = vmax.f32 %v808, %v842
        %v866 = vmax.f32 %v810, %v844
        %v867 = vmax.f32 %v812, %v846
        %v868 = vmax.f32 %v814, %v848
        %v869 = vmax.f32 %v816, %v850
        %v870 = vmax.f32 %v818, %v852
        %v871 = vmax.f32 %v820, %v854
        %s872 = scalar_lea.vmem [#allocation2], 2
        %v873 = vld [vmem:[%s872] ss:$2 sm:$0xff]
        %s874 = scalar_lea.vmem [#allocation2], 18
        %v875 = vld [vmem:[%s874] ss:$2 sm:$0xff]
        %s876 = scalar_lea.vmem [#allocation2], 34
        %v877 = vld [vmem:[%s876] ss:$2 sm:$0xff]
        %s878 = scalar_lea.vmem [#allocation2], 50
        %v879 = vld [vmem:[%s878] ss:$2 sm:$0xff]
        %s880 = scalar_lea.vmem [#allocation2], 66
        %v881 = vld [vmem:[%s880] ss:$2 sm:$0xff]
        %s882 = scalar_lea.vmem [#allocation2], 82
        %v883 = vld [vmem:[%s882] ss:$2 sm:$0xff]
        %s884 = scalar_lea.vmem [#allocation2], 98
        %v885 = vld [vmem:[%s884] ss:$2 sm:$0xff]
        %s886 = scalar_lea.vmem [#allocation2], 114
        %v887 = vld [vmem:[%s886] ss:$2 sm:$0xff]
        %s888 = scalar_lea.vmem [#allocation2], 130
        %v889 = vld [vmem:[%s888] ss:$2 sm:$0xff]
        %s890 = scalar_lea.vmem [#allocation2], 146
        %v891 = vld [vmem:[%s890] ss:$2 sm:$0xff]
        %s892 = scalar_lea.vmem [#allocation2], 162
        %v893 = vld [vmem:[%s892] ss:$2 sm:$0xff]
        %s894 = scalar_lea.vmem [#allocation2], 178
        %v895 = vld [vmem:[%s894] ss:$2 sm:$0xff]
        %s896 = scalar_lea.vmem [#allocation2], 194
        %v897 = vld [vmem:[%s896] ss:$2 sm:$0xff]
        %s898 = scalar_lea.vmem [#allocation2], 210
        %v899 = vld [vmem:[%s898] ss:$2 sm:$0xff]
        %s900 = scalar_lea.vmem [#allocation2], 226
        %v901 = vld [vmem:[%s900] ss:$2 sm:$0xff]
        %s902 = scalar_lea.vmem [#allocation2], 242
        %v903 = vld [vmem:[%s902] ss:$2 sm:$0xff]
        %s904 = scalar_lea.vmem [#allocation2], 258
        %v905 = vld [vmem:[%s904] ss:$2 sm:$0xff]
        %s906 = scalar_lea.vmem [#allocation2], 3
        %v907 = vld [vmem:[%s906] ss:$2 sm:$0xff]
        %s908 = scalar_lea.vmem [#allocation2], 19
        %v909 = vld [vmem:[%s908] ss:$2 sm:$0xff]
        %s910 = scalar_lea.vmem [#allocation2], 35
        %v911 = vld [vmem:[%s910] ss:$2 sm:$0xff]
        %s912 = scalar_lea.vmem [#allocation2], 51
        %v913 = vld [vmem:[%s912] ss:$2 sm:$0xff]
        %s914 = scalar_lea.vmem [#allocation2], 67
        %v915 = vld [vmem:[%s914] ss:$2 sm:$0xff]
        %s916 = scalar_lea.vmem [#allocation2], 83
        %v917 = vld [vmem:[%s916] ss:$2 sm:$0xff]
        %s918 = scalar_lea.vmem [#allocation2], 99
        %v919 = vld [vmem:[%s918] ss:$2 sm:$0xff]
        %s920 = scalar_lea.vmem [#allocation2], 115
        %v921 = vld [vmem:[%s920] ss:$2 sm:$0xff]
        %s922 = scalar_lea.vmem [#allocation2], 131
        %v923 = vld [vmem:[%s922] ss:$2 sm:$0xff]
        %s924 = scalar_lea.vmem [#allocation2], 147
        %v925 = vld [vmem:[%s924] ss:$2 sm:$0xff]
        %s926 = scalar_lea.vmem [#allocation2], 163
        %v927 = vld [vmem:[%s926] ss:$2 sm:$0xff]
        %s928 = scalar_lea.vmem [#allocation2], 179
        %v929 = vld [vmem:[%s928] ss:$2 sm:$0xff]
        %s930 = scalar_lea.vmem [#allocation2], 195
        %v931 = vld [vmem:[%s930] ss:$2 sm:$0xff]
        %s932 = scalar_lea.vmem [#allocation2], 211
        %v933 = vld [vmem:[%s932] ss:$2 sm:$0xff]
        %s934 = scalar_lea.vmem [#allocation2], 227
        %v935 = vld [vmem:[%s934] ss:$2 sm:$0xff]
        %s936 = scalar_lea.vmem [#allocation2], 243
        %v937 = vld [vmem:[%s936] ss:$2 sm:$0xff]
        %s938 = scalar_lea.vmem [#allocation2], 259
        %v939 = vld [vmem:[%s938] ss:$2 sm:$0xff]
        %v940 = vmax.f32 %v873, %v907
        %v941 = vmax.f32 %v875, %v909
        %v942 = vmax.f32 %v877, %v911
        %v943 = vmax.f32 %v879, %v913
        %v944 = vmax.f32 %v881, %v915
        %v945 = vmax.f32 %v883, %v917
        %v946 = vmax.f32 %v885, %v919
        %v947 = vmax.f32 %v887, %v921
        %v948 = vmax.f32 %v889, %v923
        %v949 = vmax.f32 %v891, %v925
        %v950 = vmax.f32 %v893, %v927
        %v951 = vmax.f32 %v895, %v929
        %v952 = vmax.f32 %v897, %v931
        %v953 = vmax.f32 %v899, %v933
        %v954 = vmax.f32 %v901, %v935
        %v955 = vmax.f32 %v903, %v937
        %v956 = vmax.f32 %v905, %v939
        %s957 = scalar_lea.vmem [#allocation2], 4
        %v958 = vld [vmem:[%s957] ss:$2 sm:$0xff]
        %s959 = scalar_lea.vmem [#allocation2], 20
        %v960 = vld [vmem:[%s959] ss:$2 sm:$0xff]
        %s961 = scalar_lea.vmem [#allocation2], 36
        %v962 = vld [vmem:[%s961] ss:$2 sm:$0xff]
        %s963 = scalar_lea.vmem [#allocation2], 52
        %v964 = vld [vmem:[%s963] ss:$2 sm:$0xff]
        %s965 = scalar_lea.vmem [#allocation2], 68
        %v966 = vld [vmem:[%s965] ss:$2 sm:$0xff]
        %s967 = scalar_lea.vmem [#allocation2], 84
        %v968 = vld [vmem:[%s967] ss:$2 sm:$0xff]
        %s969 = scalar_lea.vmem [#allocation2], 100
        %v970 = vld [vmem:[%s969] ss:$2 sm:$0xff]
        %s971 = scalar_lea.vmem [#allocation2], 116
        %v972 = vld [vmem:[%s971] ss:$2 sm:$0xff]
        %s973 = scalar_lea.vmem [#allocation2], 132
        %v974 = vld [vmem:[%s973] ss:$2 sm:$0xff]
        %s975 = scalar_lea.vmem [#allocation2], 148
        %v976 = vld [vmem:[%s975] ss:$2 sm:$0xff]
        %s977 = scalar_lea.vmem [#allocation2], 164
        %v978 = vld [vmem:[%s977] ss:$2 sm:$0xff]
        %s979 = scalar_lea.vmem [#allocation2], 180
        %v980 = vld [vmem:[%s979] ss:$2 sm:$0xff]
        %s981 = scalar_lea.vmem [#allocation2], 196
        %v982 = vld [vmem:[%s981] ss:$2 sm:$0xff]
        %s983 = scalar_lea.vmem [#allocation2], 212
        %v984 = vld [vmem:[%s983] ss:$2 sm:$0xff]
        %s985 = scalar_lea.vmem [#allocation2], 228
        %v986 = vld [vmem:[%s985] ss:$2 sm:$0xff]
        %s987 = scalar_lea.vmem [#allocation2], 244
        %v988 = vld [vmem:[%s987] ss:$2 sm:$0xff]
        %s989 = scalar_lea.vmem [#allocation2], 260
        %v990 = vld [vmem:[%s989] ss:$2 sm:$0xff]
        %s991 = scalar_lea.vmem [#allocation2], 5
        %v992 = vld [vmem:[%s991] ss:$2 sm:$0xff]
        %s993 = scalar_lea.vmem [#allocation2], 21
        %v994 = vld [vmem:[%s993] ss:$2 sm:$0xff]
        %s995 = scalar_lea.vmem [#allocation2], 37
        %v996 = vld [vmem:[%s995] ss:$2 sm:$0xff]
        %s997 = scalar_lea.vmem [#allocation2], 53
        %v998 = vld [vmem:[%s997] ss:$2 sm:$0xff]
        %s999 = scalar_lea.vmem [#allocation2], 69
        %v1000 = vld [vmem:[%s999] ss:$2 sm:$0xff]
        %s1001 = scalar_lea.vmem [#allocation2], 85
        %v1002 = vld [vmem:[%s1001] ss:$2 sm:$0xff]
        %s1003 = scalar_lea.vmem [#allocation2], 101
        %v1004 = vld [vmem:[%s1003] ss:$2 sm:$0xff]
        %s1005 = scalar_lea.vmem [#allocation2], 117
        %v1006 = vld [vmem:[%s1005] ss:$2 sm:$0xff]
        %s1007 = scalar_lea.vmem [#allocation2], 133
        %v1008 = vld [vmem:[%s1007] ss:$2 sm:$0xff]
        %s1009 = scalar_lea.vmem [#allocation2], 149
        %v1010 = vld [vmem:[%s1009] ss:$2 sm:$0xff]
        %s1011 = scalar_lea.vmem [#allocation2], 165
        %v1012 = vld [vmem:[%s1011] ss:$2 sm:$0xff]
        %s1013 = scalar_lea.vmem [#allocation2], 181
        %v1014 = vld [vmem:[%s1013] ss:$2 sm:$0xff]
        %s1015 = scalar_lea.vmem [#allocation2], 197
        %v1016 = vld [vmem:[%s1015] ss:$2 sm:$0xff]
        %s1017 = scalar_lea.vmem [#allocation2], 213
        %v1018 = vld [vmem:[%s1017] ss:$2 sm:$0xff]
        %s1019 = scalar_lea.vmem [#allocation2], 229
        %v1020 = vld [vmem:[%s1019] ss:$2 sm:$0xff]
        %s1021 = scalar_lea.vmem [#allocation2], 245
        %v1022 = vld [vmem:[%s1021] ss:$2 sm:$0xff]
        %s1023 = scalar_lea.vmem [#allocation2], 261
        %v1024 = vld [vmem:[%s1023] ss:$2 sm:$0xff]
        %v1025 = vmax.f32 %v958, %v992
        %v1026 = vmax.f32 %v960, %v994
        %v1027 = vmax.f32 %v962, %v996
        %v1028 = vmax.f32 %v964, %v998
        %v1029 = vmax.f32 %v966, %v1000
        %v1030 = vmax.f32 %v968, %v1002
        %v1031 = vmax.f32 %v970, %v1004
        %v1032 = vmax.f32 %v972, %v1006
        %v1033 = vmax.f32 %v974, %v1008
        %v1034 = vmax.f32 %v976, %v1010
        %v1035 = vmax.f32 %v978, %v1012
        %v1036 = vmax.f32 %v980, %v1014
        %v1037 = vmax.f32 %v982, %v1016
        %v1038 = vmax.f32 %v984, %v1018
        %v1039 = vmax.f32 %v986, %v1020
        %v1040 = vmax.f32 %v988, %v1022
        %v1041 = vmax.f32 %v990, %v1024
        %1059 = vrot.lane.b32.xlu0 %v940, 64
        %v1060 = vpop.permute.xlu0 %1059
        %1061 = vrot.lane.b32.xlu0 %v941, 64
        %v1062 = vpop.permute.xlu0 %1061
        %1063 = vrot.lane.b32.xlu0 %v942, 64
        %v1064 = vpop.permute.xlu0 %1063
        %1065 = vrot.lane.b32.xlu0 %v943, 64
        %v1066 = vpop.permute.xlu0 %1065
        %1067 = vrot.lane.b32.xlu0 %v944, 64
        %v1068 = vpop.permute.xlu0 %1067
        %1069 = vrot.lane.b32.xlu0 %v945, 64
        %v1070 = vpop.permute.xlu0 %1069
        %1071 = vrot.lane.b32.xlu0 %v946, 64
        %v1072 = vpop.permute.xlu0 %1071
        %1073 = vrot.lane.b32.xlu0 %v947, 64
        %v1074 = vpop.permute.xlu0 %1073
        %1075 = vrot.lane.b32.xlu0 %v948, 64
        %v1076 = vpop.permute.xlu0 %1075
        %1077 = vrot.lane.b32.xlu0 %v949, 64
        %v1078 = vpop.permute.xlu0 %1077
        %1079 = vrot.lane.b32.xlu0 %v950, 64
        %v1080 = vpop.permute.xlu0 %1079
        %1081 = vrot.lane.b32.xlu0 %v951, 64
        %v1082 = vpop.permute.xlu0 %1081
        %1083 = vrot.lane.b32.xlu0 %v952, 64
        %v1084 = vpop.permute.xlu0 %1083
        %1085 = vrot.lane.b32.xlu0 %v953, 64
        %v1086 = vpop.permute.xlu0 %1085
        %1087 = vrot.lane.b32.xlu0 %v954, 64
        %v1088 = vpop.permute.xlu0 %1087
        %1089 = vrot.lane.b32.xlu0 %v955, 64
        %v1090 = vpop.permute.xlu0 %1089
        %1091 = vrot.lane.b32.xlu0 %v956, 64
        %v1092 = vpop.permute.xlu0 %1091
        %v1110 = vsel %vm752, %v855, %v1060
        %v1111 = vsel %vm752, %v856, %v1062
        %v1112 = vsel %vm752, %v857, %v1064
        %v1113 = vsel %vm752, %v858, %v1066
        %v1114 = vsel %vm752, %v859, %v1068
        %v1115 = vsel %vm752, %v860, %v1070
        %v1116 = vsel %vm752, %v861, %v1072
        %v1117 = vsel %vm752, %v862, %v1074
        %v1118 = vsel %vm752, %v863, %v1076
        %v1119 = vsel %vm752, %v864, %v1078
        %v1120 = vsel %vm752, %v865, %v1080
        %v1121 = vsel %vm752, %v866, %v1082
        %v1122 = vsel %vm752, %v867, %v1084
        %v1123 = vsel %vm752, %v868, %v1086
        %v1124 = vsel %vm752, %v869, %v1088
        %v1125 = vsel %vm752, %v870, %v1090
        %v1126 = vsel %vm752, %v871, %v1092
        %v1127 = vld [vmem:[%s3] sm:$0xff]
        %v1128 = vld [vmem:[%s3 + $0x8] sm:$0xff]
        %v1129 = vld [vmem:[%s3 + $0x10] sm:$0xff]
        %v1130 = vld [vmem:[%s3 + $0x18] sm:$0xff]
        %v1131 = vld [vmem:[%s3 + $0x20] sm:$0xff]
        %v1132 = vld [vmem:[%s3 + $0x28] sm:$0xff]
        %v1133 = vld [vmem:[%s3 + $0x30] sm:$0xff]
        %v1134 = vld [vmem:[%s3 + $0x38] sm:$0xff]
        %v1135 = vld [vmem:[%s3 + $0x40] sm:$0xff]
        %v1136 = vld [vmem:[%s3 + $0x48] sm:$0xff]
        %v1137 = vld [vmem:[%s3 + $0x50] sm:$0xff]
        %v1138 = vld [vmem:[%s3 + $0x58] sm:$0xff]
        %v1139 = vld [vmem:[%s3 + $0x60] sm:$0xff]
        %v1140 = vld [vmem:[%s3 + $0x68] sm:$0xff]
        %v1141 = vld [vmem:[%s3 + $0x70] sm:$0xff]
        %v1142 = vld [vmem:[%s3 + $0x78] sm:$0xff]
        %v1143 = vld [vmem:[%s3 + $0x80] sm:$0xff]
        %v1144 = vld [vmem:[%s3 + $0x88] sm:$0xff]
        %v1145 = vld [vmem:[%s3 + $0x90] sm:$0xff]
        %v1146 = vld [vmem:[%s3 + $0x98] sm:$0xff]
        %v1147 = vld [vmem:[%s3 + $0xa0] sm:$0xff]
        %v1148 = vld [vmem:[%s3 + $0xa8] sm:$0xff]
        %v1149 = vld [vmem:[%s3 + $0xb0] sm:$0xff]
        %v1150 = vld [vmem:[%s3 + $0xb8] sm:$0xff]
        %v1151 = vld [vmem:[%s4] sm:$0x1]
        %v1153 = vlaneseq
        %v1154 = vshrl.u32 %v1153, 7
        %v1155 = vsub.s32 0, %v1154
        %v1156 = vrot.slane %v1151, %v1155
        %v1159 = vsel %vm752, %v1025, 0
        %v1162 = vsel %vm752, %v1026, 0
        %v1165 = vsel %vm752, %v1027, 0
        %v1168 = vsel %vm752, %v1028, 0
        %v1171 = vsel %vm752, %v1029, 0
        %v1174 = vsel %vm752, %v1030, 0
        %v1177 = vsel %vm752, %v1031, 0
        %v1180 = vsel %vm752, %v1032, 0
        %v1183 = vsel %vm752, %v1033, 0
        %v1186 = vsel %vm752, %v1034, 0
        %v1189 = vsel %vm752, %v1035, 0
        %v1192 = vsel %vm752, %v1036, 0
        %v1195 = vsel %vm752, %v1037, 0
        %v1198 = vsel %vm752, %v1038, 0
        %v1201 = vsel %vm752, %v1039, 0
        %v1204 = vsel %vm752, %v1040, 0
        %v1207 = vsel %vm752, %v1041, 0
        %1209 = vmatprep.subr.mxu0 0.0
        %1210 = vmatpush1.msra.mxu0 %v1127
        %1211 = vmatprep.subr.mxu0 0.0
        %1212 = vmatpush1.msra.mxu0 %v1128
        %1213 = vmatprep.subr.mxu0 0.0
        %1214 = vmatpush1.msra.mxu0 %v1129
        %1215 = vmatprep.subr.mxu0 0.0
        %1216 = vmatpush1.msra.mxu0 %v1130
        %1217 = vmatprep.subr.mxu0 0.0
        %1218 = vmatpush1.msra.mxu0 %v1131
        %1219 = vmatprep.subr.mxu0 0.0
        %1220 = vmatpush1.msra.mxu0 %v1132
        %1221 = vmatprep.subr.mxu0 0.0
        %1222 = vmatpush1.msra.mxu0 %v1133
        %1223 = vmatprep.subr.mxu0 0.0
        %1224 = vmatpush1.msra.mxu0 %v1134
        %1225 = vmatprep.subr.mxu0 0.0
        %1226 = vmatpush1.msra.mxu0 %v1135
        %1227 = vmatprep.subr.mxu0 0.0
        %1228 = vmatpush1.msra.mxu0 %v1136
        %1229 = vmatprep.subr.mxu0 0.0
        %1230 = vmatpush1.msra.mxu0 %v1137
        %1231 = vmatprep.subr.mxu0 0.0
        %1232 = vmatpush1.msra.mxu0 %v1138
        %1233 = vmatprep.subr.mxu0 0.0
        %1234 = vmatpush1.msra.mxu0 %v1139
        %1235 = vmatprep.subr.mxu0 0.0
        %1236 = vmatpush1.msra.mxu0 %v1140
        %1237 = vmatprep.subr.mxu0 0.0
        %1238 = vmatpush1.msra.mxu0 %v1141
        %1239 = vmatprep.subr.mxu0 0.0
        %1240 = vmatpush1.msra.mxu0 %v1142
        %1241 = vmatprep.subr.mxu0 0.0
        %1242 = vmatpush1.msra.mxu0 %v1143
        %1243 = vmatprep.subr.mxu0 0.0
        %1244 = vmatpush1.msra.mxu0 %v1144
        %1245 = vmatprep.subr.mxu0 0.0
        %1246 = vmatpush1.msra.mxu0 %v1145
        %1247 = vmatprep.subr.mxu0 0.0
        %1248 = vmatpush1.msra.mxu0 %v1146
        %1249 = vmatprep.subr.mxu0 0.0
        %1250 = vmatpush1.msra.mxu0 %v1147
        %1251 = vmatprep.subr.mxu0 0.0
        %1252 = vmatpush1.msra.mxu0 %v1148
        %1253 = vmatprep.subr.mxu0 0.0
        %1254 = vmatpush1.msra.mxu0 %v1149
        %1255 = vmatprep.subr.mxu0 0.0
        %1256 = vmatpush1.msra.mxu0 %v1150
        %1257 = vmatprep.subr.mxu0 0.0
        %1258 = vmatpush1.msra.mxu0 0.0
        %1259 = vmatprep.subr.mxu0 0.0
        %1260 = vmatpush1.msra.mxu0 0.0
        %1261 = vmatprep.subr.mxu0 0.0
        %1262 = vmatpush1.msra.mxu0 0.0
        %1263 = vmatprep.subr.mxu0 0.0
        %1264 = vmatpush1.msra.mxu0 0.0
        %1265 = vmatprep.subr.mxu0 0.0
        %1266 = vmatpush1.msra.mxu0 0.0
        %1267 = vmatprep.subr.mxu0 0.0
        %1268 = vmatpush1.msra.mxu0 0.0
        %1269 = vmatprep.subr.mxu0 0.0
        %1270 = vmatpush1.msra.mxu0 0.0
        %1271 = vmatprep.subr.mxu0 0.0
        %1272 = vmatpush1.msra.mxu0 0.0
        %1273 = vmatprep.mubr.f32.mxu0 %v1159
        %1274 = vmatmul.mubr.f32.gmra.mrb[0].mxu0 %v1110
        %v1275 = vpop.f32.mrb[0].mxu0
        %v1276 = vadd.f32 %v1156, %v1275
        %v1277 = vpop.f32.mrb[0].mxu0
        %1278 = vmatprep.mubr.f32.mxu0 %v1162
        %1279 = vmatmul.mubr.f32.gmra.mrb[0].mxu0 %v1111
        %v1280 = vpop.f32.mrb[0].mxu0
        %v1281 = vadd.f32 %v1156, %v1280
        %v1282 = vpop.f32.mrb[0].mxu0
        %1283 = vmatprep.mubr.f32.mxu0 %v1165
        %1284 = vmatmul.mubr.f32.gmra.mrb[0].mxu0 %v1112
        %v1285 = vpop.f32.mrb[0].mxu0
        %v1286 = vadd.f32 %v1156, %v1285
        %v1287 = vpop.f32.mrb[0].mxu0
        %1288 = vmatprep.mubr.f32.mxu0 %v1168
        %1289 = vmatmul.mubr.f32.gmra.mrb[0].mxu0 %v1113
        %v1290 = vpop.f32.mrb[0].mxu0
        %v1291 = vadd.f32 %v1156, %v1290
        %v1292 = vpop.f32.mrb[0].mxu0
        %1293 = vmatprep.mubr.f32.mxu0 %v1171
        %1294 = vmatmul.mubr.f32.gmra.mrb[0].mxu0 %v1114
        %v1295 = vpop.f32.mrb[0].mxu0
        %v1296 = vadd.f32 %v1156, %v1295
        %v1297 = vpop.f32.mrb[0].mxu0
        %1298 = vmatprep.mubr.f32.mxu0 %v1174
        %1299 = vmatmul.mubr.f32.gmra.mrb[0].mxu0 %v1115
        %v1300 = vpop.f32.mrb[0].mxu0
        %v1301 = vadd.f32 %v1156, %v1300
        %v1302 = vpop.f32.mrb[0].mxu0
        %1303 = vmatprep.mubr.f32.mxu0 %v1177
        %1304 = vmatmul.mubr.f32.gmra.mrb[0].mxu0 %v1116
        %v1305 = vpop.f32.mrb[0].mxu0
        %v1306 = vadd.f32 %v1156, %v1305
        %v1307 = vpop.f32.mrb[0].mxu0
        %1308 = vmatprep.mubr.f32.mxu0 %v1180
        %1309 = vmatmul.mubr.f32.gmra.mrb[0].mxu0 %v1117
        %v1310 = vpop.f32.mrb[0].mxu0
        %v1311 = vadd.f32 %v1156, %v1310
        %v1312 = vpop.f32.mrb[0].mxu0
        %1313 = vmatprep.mubr.f32.mxu0 %v1183
        %1314 = vmatmul.mubr.f32.gmra.mrb[0].mxu0 %v1118
        %v1315 = vpop.f32.mrb[0].mxu0
        %v1316 = vadd.f32 %v1156, %v1315
        %v1317 = vpop.f32.mrb[0].mxu0
        %1318 = vmatprep.mubr.f32.mxu0 %v1186
        %1319 = vmatmul.mubr.f32.gmra.mrb[0].mxu0 %v1119
        %v1320 = vpop.f32.mrb[0].mxu0
        %v1321 = vadd.f32 %v1156, %v1320
        %v1322 = vpop.f32.mrb[0].mxu0
        %1323 = vmatprep.mubr.f32.mxu0 %v1189
        %1324 = vmatmul.mubr.f32.gmra.mrb[0].mxu0 %v1120
        %v1325 = vpop.f32.mrb[0].mxu0
        %v1326 = vadd.f32 %v1156, %v1325
        %v1327 = vpop.f32.mrb[0].mxu0
        %1328 = vmatprep.mubr.f32.mxu0 %v1192
        %1329 = vmatmul.mubr.f32.gmra.mrb[0].mxu0 %v1121
        %v1330 = vpop.f32.mrb[0].mxu0
        %v1331 = vadd.f32 %v1156, %v1330
        %v1332 = vpop.f32.mrb[0].mxu0
        %1333 = vmatprep.mubr.f32.mxu0 %v1195
        %1334 = vmatmul.mubr.f32.gmra.mrb[0].mxu0 %v1122
        %v1335 = vpop.f32.mrb[0].mxu0
        %v1336 = vadd.f32 %v1156, %v1335
        %v1337 = vpop.f32.mrb[0].mxu0
        %1338 = vmatprep.mubr.f32.mxu0 %v1198
        %1339 = vmatmul.mubr.f32.gmra.mrb[0].mxu0 %v1123
        %v1340 = vpop.f32.mrb[0].mxu0
        %v1341 = vadd.f32 %v1156, %v1340
        %v1342 = vpop.f32.mrb[0].mxu0
        %1343 = vmatprep.mubr.f32.mxu0 %v1201
        %1344 = vmatmul.mubr.f32.gmra.mrb[0].mxu0 %v1124
        %v1345 = vpop.f32.mrb[0].mxu0
        %v1346 = vadd.f32 %v1156, %v1345
        %v1347 = vpop.f32.mrb[0].mxu0
        %1348 = vmatprep.mubr.f32.mxu0 %v1204
        %1349 = vmatmul.mubr.f32.gmra.mrb[0].mxu0 %v1125
        %v1350 = vpop.f32.mrb[0].mxu0
        %v1351 = vadd.f32 %v1156, %v1350
        %v1352 = vpop.f32.mrb[0].mxu0
        %1353 = vmatprep.mubr.f32.mxu0 %v1207
        %1354 = vmatmul.mubr.f32.gmra.mrb[0].mxu0 %v1126
        %v1355 = vpop.f32.mrb[0].mxu0
        %v1356 = vadd.f32 %v1156, %v1355
        %v1357 = vpop.f32.mrb[0].mxu0
        %1358 = vdwg.mxu0
        %v1359 = vmax.f32 %v1276, 0.0
        %v1360 = vmax.f32 %v1281, 0.0
        %v1361 = vmax.f32 %v1286, 0.0
        %v1362 = vmax.f32 %v1291, 0.0
        %v1363 = vmax.f32 %v1296, 0.0
        %v1364 = vmax.f32 %v1301, 0.0
        %v1365 = vmax.f32 %v1306, 0.0
        %v1366 = vmax.f32 %v1311, 0.0
        %v1367 = vmax.f32 %v1316, 0.0
        %v1368 = vmax.f32 %v1321, 0.0
        %v1369 = vmax.f32 %v1326, 0.0
        %v1370 = vmax.f32 %v1331, 0.0
        %v1371 = vmax.f32 %v1336, 0.0
        %v1372 = vmax.f32 %v1341, 0.0
        %v1373 = vmax.f32 %v1346, 0.0
        %v1374 = vmax.f32 %v1351, 0.0
        %v1375 = vmax.f32 %v1356, 0.0
        %1376 = vst.msk [vmem:[#allocation3] sm:$0xff] %vm752, %v1359
        %1377 = vst.msk [vmem:[#allocation3 + $0x8] sm:$0xff] %vm752, %v1360
        %1378 = vst.msk [vmem:[#allocation3 + $0x10] sm:$0xff] %vm752, %v1361
        %1379 = vst.msk [vmem:[#allocation3 + $0x18] sm:$0xff] %vm752, %v1362
        %1380 = vst.msk [vmem:[#allocation3 + $0x20] sm:$0xff] %vm752, %v1363
        %1381 = vst.msk [vmem:[#allocation3 + $0x28] sm:$0xff] %vm752, %v1364
        %1382 = vst.msk [vmem:[#allocation3 + $0x30] sm:$0xff] %vm752, %v1365
        %1383 = vst.msk [vmem:[#allocation3 + $0x38] sm:$0xff] %vm752, %v1366
        %1384 = vst.msk [vmem:[#allocation3 + $0x40] sm:$0xff] %vm752, %v1367
        %1385 = vst.msk [vmem:[#allocation3 + $0x48] sm:$0xff] %vm752, %v1368
        %1386 = vst.msk [vmem:[#allocation3 + $0x50] sm:$0xff] %vm752, %v1369
        %1387 = vst.msk [vmem:[#allocation3 + $0x58] sm:$0xff] %vm752, %v1370
        %1388 = vst.msk [vmem:[#allocation3 + $0x60] sm:$0xff] %vm752, %v1371
        %1389 = vst.msk [vmem:[#allocation3 + $0x68] sm:$0xff] %vm752, %v1372
        %1390 = vst.msk [vmem:[#allocation3 + $0x70] sm:$0xff] %vm752, %v1373
        %1391 = vst.msk [vmem:[#allocation3 + $0x78] sm:$0xff] %vm752, %v1374
        %1392 = vst.msk [vmem:[#allocation3 + $0x80] sm:$0xff] %vm752, %v1375
        %1393 = vst.msk [vmem:[#allocation3 + $0x88] sm:$0xff] %vm752, 0.0
        %v1394 = vld [vmem:[#allocation3] ss:$2 sm:$0xff]
        %s1395 = scalar_lea.vmem [#allocation3], 16
        %v1396 = vld [vmem:[%s1395] ss:$2 sm:$0xff]
        %s1397 = scalar_lea.vmem [#allocation3], 32
        %v1398 = vld [vmem:[%s1397] ss:$2 sm:$0xff]
        %s1399 = scalar_lea.vmem [#allocation3], 48
        %v1400 = vld [vmem:[%s1399] ss:$2 sm:$0xff]
        %s1401 = scalar_lea.vmem [#allocation3], 64
        %v1402 = vld [vmem:[%s1401] ss:$2 sm:$0xff]
        %s1403 = scalar_lea.vmem [#allocation3], 80
        %v1404 = vld [vmem:[%s1403] ss:$2 sm:$0xff]
        %s1405 = scalar_lea.vmem [#allocation3], 96
        %v1406 = vld [vmem:[%s1405] ss:$2 sm:$0xff]
        %s1407 = scalar_lea.vmem [#allocation3], 112
        %v1408 = vld [vmem:[%s1407] ss:$2 sm:$0xff]
        %s1409 = scalar_lea.vmem [#allocation3], 128
        %v1410 = vld [vmem:[%s1409] ss:$2 sm:$0xf]
        %s1411 = scalar_lea.vmem [#allocation3], 1
        %v1412 = vld [vmem:[%s1411] ss:$2 sm:$0xff]
        %s1413 = scalar_lea.vmem [#allocation3], 17
        %v1414 = vld [vmem:[%s1413] ss:$2 sm:$0xff]
        %s1415 = scalar_lea.vmem [#allocation3], 33
        %v1416 = vld [vmem:[%s1415] ss:$2 sm:$0xff]
        %s1417 = scalar_lea.vmem [#allocation3], 49
        %v1418 = vld [vmem:[%s1417] ss:$2 sm:$0xff]
        %s1419 = scalar_lea.vmem [#allocation3], 65
        %v1420 = vld [vmem:[%s1419] ss:$2 sm:$0xff]
        %s1421 = scalar_lea.vmem [#allocation3], 81
        %v1422 = vld [vmem:[%s1421] ss:$2 sm:$0xff]
        %s1423 = scalar_lea.vmem [#allocation3], 97
        %v1424 = vld [vmem:[%s1423] ss:$2 sm:$0xff]
        %s1425 = scalar_lea.vmem [#allocation3], 113
        %v1426 = vld [vmem:[%s1425] ss:$2 sm:$0xff]
        %s1427 = scalar_lea.vmem [#allocation3], 129
        %v1428 = vld [vmem:[%s1427] ss:$2 sm:$0xf]
        %v1429 = vmax.f32 %v1394, %v1412
        %v1430 = vmax.f32 %v1396, %v1414
        %v1431 = vmax.f32 %v1398, %v1416
        %v1432 = vmax.f32 %v1400, %v1418
        %v1433 = vmax.f32 %v1402, %v1420
        %v1434 = vmax.f32 %v1404, %v1422
        %v1435 = vmax.f32 %v1406, %v1424
        %v1436 = vmax.f32 %v1408, %v1426
        %v1437 = vmax.f32 %v1410, %v1428
        %s1438 = scalar_lea.vmem [#allocation3], 2
        %v1439 = vld [vmem:[%s1438] ss:$2 sm:$0xff]
        %s1440 = scalar_lea.vmem [#allocation3], 18
        %v1441 = vld [vmem:[%s1440] ss:$2 sm:$0xff]
        %s1442 = scalar_lea.vmem [#allocation3], 34
        %v1443 = vld [vmem:[%s1442] ss:$2 sm:$0xff]
        %s1444 = scalar_lea.vmem [#allocation3], 50
        %v1445 = vld [vmem:[%s1444] ss:$2 sm:$0xff]
        %s1446 = scalar_lea.vmem [#allocation3], 66
        %v1447 = vld [vmem:[%s1446] ss:$2 sm:$0xff]
        %s1448 = scalar_lea.vmem [#allocation3], 82
        %v1449 = vld [vmem:[%s1448] ss:$2 sm:$0xff]
        %s1450 = scalar_lea.vmem [#allocation3], 98
        %v1451 = vld [vmem:[%s1450] ss:$2 sm:$0xff]
        %s1452 = scalar_lea.vmem [#allocation3], 114
        %v1453 = vld [vmem:[%s1452] ss:$2 sm:$0xff]
        %s1454 = scalar_lea.vmem [#allocation3], 130
        %v1455 = vld [vmem:[%s1454] ss:$2 sm:$0xf]
        %s1456 = scalar_lea.vmem [#allocation3], 3
        %v1457 = vld [vmem:[%s1456] ss:$2 sm:$0xff]
        %s1458 = scalar_lea.vmem [#allocation3], 19
        %v1459 = vld [vmem:[%s1458] ss:$2 sm:$0xff]
        %s1460 = scalar_lea.vmem [#allocation3], 35
        %v1461 = vld [vmem:[%s1460] ss:$2 sm:$0xff]
        %s1462 = scalar_lea.vmem [#allocation3], 51
        %v1463 = vld [vmem:[%s1462] ss:$2 sm:$0xff]
        %s1464 = scalar_lea.vmem [#allocation3], 67
        %v1465 = vld [vmem:[%s1464] ss:$2 sm:$0xff]
        %s1466 = scalar_lea.vmem [#allocation3], 83
        %v1467 = vld [vmem:[%s1466] ss:$2 sm:$0xff]
        %s1468 = scalar_lea.vmem [#allocation3], 99
        %v1469 = vld [vmem:[%s1468] ss:$2 sm:$0xff]
        %s1470 = scalar_lea.vmem [#allocation3], 115
        %v1471 = vld [vmem:[%s1470] ss:$2 sm:$0xff]
        %s1472 = scalar_lea.vmem [#allocation3], 131
        %v1473 = vld [vmem:[%s1472] ss:$2 sm:$0xf]
        %v1474 = vmax.f32 %v1439, %v1457
        %v1475 = vmax.f32 %v1441, %v1459
        %v1476 = vmax.f32 %v1443, %v1461
        %v1477 = vmax.f32 %v1445, %v1463
        %v1478 = vmax.f32 %v1447, %v1465
        %v1479 = vmax.f32 %v1449, %v1467
        %v1480 = vmax.f32 %v1451, %v1469
        %v1481 = vmax.f32 %v1453, %v1471
        %v1482 = vmax.f32 %v1455, %v1473
        %s1483 = scalar_lea.vmem [#allocation3], 4
        %v1484 = vld [vmem:[%s1483] ss:$2 sm:$0xff]
        %s1485 = scalar_lea.vmem [#allocation3], 20
        %v1486 = vld [vmem:[%s1485] ss:$2 sm:$0xff]
        %s1487 = scalar_lea.vmem [#allocation3], 36
        %v1488 = vld [vmem:[%s1487] ss:$2 sm:$0xff]
        %s1489 = scalar_lea.vmem [#allocation3], 52
        %v1490 = vld [vmem:[%s1489] ss:$2 sm:$0xff]
        %s1491 = scalar_lea.vmem [#allocation3], 68
        %v1492 = vld [vmem:[%s1491] ss:$2 sm:$0xff]
        %s1493 = scalar_lea.vmem [#allocation3], 84
        %v1494 = vld [vmem:[%s1493] ss:$2 sm:$0xff]
        %s1495 = scalar_lea.vmem [#allocation3], 100
        %v1496 = vld [vmem:[%s1495] ss:$2 sm:$0xff]
        %s1497 = scalar_lea.vmem [#allocation3], 116
        %v1498 = vld [vmem:[%s1497] ss:$2 sm:$0xff]
        %s1499 = scalar_lea.vmem [#allocation3], 132
        %v1500 = vld [vmem:[%s1499] ss:$2 sm:$0xf]
        %s1501 = scalar_lea.vmem [#allocation3], 5
        %v1502 = vld [vmem:[%s1501] ss:$2 sm:$0xff]
        %s1503 = scalar_lea.vmem [#allocation3], 21
        %v1504 = vld [vmem:[%s1503] ss:$2 sm:$0xff]
        %s1505 = scalar_lea.vmem [#allocation3], 37
        %v1506 = vld [vmem:[%s1505] ss:$2 sm:$0xff]
        %s1507 = scalar_lea.vmem [#allocation3], 53
        %v1508 = vld [vmem:[%s1507] ss:$2 sm:$0xff]
        %s1509 = scalar_lea.vmem [#allocation3], 69
        %v1510 = vld [vmem:[%s1509] ss:$2 sm:$0xff]
        %s1511 = scalar_lea.vmem [#allocation3], 85
        %v1512 = vld [vmem:[%s1511] ss:$2 sm:$0xff]
        %s1513 = scalar_lea.vmem [#allocation3], 101
        %v1514 = vld [vmem:[%s1513] ss:$2 sm:$0xff]
        %s1515 = scalar_lea.vmem [#allocation3], 117
        %v1516 = vld [vmem:[%s1515] ss:$2 sm:$0xff]
        %s1517 = scalar_lea.vmem [#allocation3], 133
        %v1518 = vld [vmem:[%s1517] ss:$2 sm:$0xf]
        %v1519 = vmax.f32 %v1484, %v1502
        %v1520 = vmax.f32 %v1486, %v1504
        %v1521 = vmax.f32 %v1488, %v1506
        %v1522 = vmax.f32 %v1490, %v1508
        %v1523 = vmax.f32 %v1492, %v1510
        %v1524 = vmax.f32 %v1494, %v1512
        %v1525 = vmax.f32 %v1496, %v1514
        %v1526 = vmax.f32 %v1498, %v1516
        %v1527 = vmax.f32 %v1500, %v1518
        %1537 = vrot.lane.b32.xlu0 %v1474, 64
        %v1538 = vpop.permute.xlu0 %1537
        %1539 = vrot.lane.b32.xlu0 %v1475, 64
        %v1540 = vpop.permute.xlu0 %1539
        %1541 = vrot.lane.b32.xlu0 %v1476, 64
        %v1542 = vpop.permute.xlu0 %1541
        %1543 = vrot.lane.b32.xlu0 %v1477, 64
        %v1544 = vpop.permute.xlu0 %1543
        %1545 = vrot.lane.b32.xlu0 %v1478, 64
        %v1546 = vpop.permute.xlu0 %1545
        %1547 = vrot.lane.b32.xlu0 %v1479, 64
        %v1548 = vpop.permute.xlu0 %1547
        %1549 = vrot.lane.b32.xlu0 %v1480, 64
        %v1550 = vpop.permute.xlu0 %1549
        %1551 = vrot.lane.b32.xlu0 %v1481, 64
        %v1552 = vpop.permute.xlu0 %1551
        %1553 = vrot.lane.b32.xlu0 %v1482, 64
        %v1554 = vpop.permute.xlu0 %1553
        %v1564 = vsel %vm752, %v1429, %v1538
        %v1565 = vsel %vm752, %v1430, %v1540
        %v1566 = vsel %vm752, %v1431, %v1542
        %v1567 = vsel %vm752, %v1432, %v1544
        %v1568 = vsel %vm752, %v1433, %v1546
        %v1569 = vsel %vm752, %v1434, %v1548
        %v1570 = vsel %vm752, %v1435, %v1550
        %v1571 = vsel %vm752, %v1436, %v1552
        %v1572 = vsel %vm752, %v1437, %v1554
        %v1573 = vld [vmem:[%s5] sm:$0xff]
        %v1574 = vld [vmem:[%s5 + $0x8] sm:$0xff]
        %v1575 = vld [vmem:[%s5 + $0x10] sm:$0xff]
        %v1576 = vld [vmem:[%s5 + $0x18] sm:$0xff]
        %v1577 = vld [vmem:[%s5 + $0x20] sm:$0xff]
        %v1578 = vld [vmem:[%s5 + $0x28] sm:$0xff]
        %v1579 = vld [vmem:[%s5 + $0x30] sm:$0xff]
        %v1580 = vld [vmem:[%s5 + $0x38] sm:$0xff]
        %v1581 = vld [vmem:[%s5 + $0x40] sm:$0xff]
        %v1582 = vld [vmem:[%s5 + $0x48] sm:$0xff]
        %v1583 = vld [vmem:[%s5 + $0x50] sm:$0xff]
        %v1584 = vld [vmem:[%s5 + $0x58] sm:$0xff]
        %v1585 = vld [vmem:[%s5 + $0x60] sm:$0xff]
        %v1586 = vld [vmem:[%s5 + $0x68] sm:$0xff]
        %v1587 = vld [vmem:[%s5 + $0x70] sm:$0xff]
        %v1588 = vld [vmem:[%s5 + $0x78] sm:$0xff]
        %v1589 = vld [vmem:[%s5 + $0x80] sm:$0xff]
        %v1590 = vld [vmem:[%s5 + $0x88] sm:$0xff]
        %v1591 = vld [vmem:[%s5 + $0x90] sm:$0xff]
        %v1592 = vld [vmem:[%s5 + $0x98] sm:$0xff]
        %v1593 = vld [vmem:[%s5 + $0xa0] sm:$0xff]
        %v1594 = vld [vmem:[%s5 + $0xa8] sm:$0xff]
        %v1595 = vld [vmem:[%s5 + $0xb0] sm:$0xff]
        %v1596 = vld [vmem:[%s5 + $0xb8] sm:$0xff]
        %v1597 = vld [vmem:[%s6] sm:$0x1]
        %v1599 = vlaneseq
        %v1600 = vshrl.u32 %v1599, 7
        %v1601 = vsub.s32 0, %v1600
        %v1602 = vrot.slane %v1597, %v1601
        %v1605 = vsel %vm752, %v1519, 0
        %v1608 = vsel %vm752, %v1520, 0
        %v1611 = vsel %vm752, %v1521, 0
        %v1614 = vsel %vm752, %v1522, 0
        %v1617 = vsel %vm752, %v1523, 0
        %v1620 = vsel %vm752, %v1524, 0
        %v1623 = vsel %vm752, %v1525, 0
        %v1626 = vsel %vm752, %v1526, 0
        %v1629 = vsel %vm752, %v1527, 0
        %1631 = vmatprep.subr.mxu0 0.0
        %1632 = vmatpush1.msra.mxu0 %v1573
        %1633 = vmatprep.subr.mxu0 0.0
        %1634 = vmatpush1.msra.mxu0 %v1574
        %1635 = vmatprep.subr.mxu0 0.0
        %1636 = vmatpush1.msra.mxu0 %v1575
        %1637 = vmatprep.subr.mxu0 0.0
        %1638 = vmatpush1.msra.mxu0 %v1576
        %1639 = vmatprep.subr.mxu0 0.0
        %1640 = vmatpush1.msra.mxu0 %v1577
        %1641 = vmatprep.subr.mxu0 0.0
        %1642 = vmatpush1.msra.mxu0 %v1578
        %1643 = vmatprep.subr.mxu0 0.0
        %1644 = vmatpush1.msra.mxu0 %v1579
        %1645 = vmatprep.subr.mxu0 0.0
        %1646 = vmatpush1.msra.mxu0 %v1580
        %1647 = vmatprep.subr.mxu0 0.0
        %1648 = vmatpush1.msra.mxu0 %v1581
        %1649 = vmatprep.subr.mxu0 0.0
        %1650 = vmatpush1.msra.mxu0 %v1582
        %1651 = vmatprep.subr.mxu0 0.0
        %1652 = vmatpush1.msra.mxu0 %v1583
        %1653 = vmatprep.subr.mxu0 0.0
        %1654 = vmatpush1.msra.mxu0 %v1584
        %1655 = vmatprep.subr.mxu0 0.0
        %1656 = vmatpush1.msra.mxu0 %v1585
        %1657 = vmatprep.subr.mxu0 0.0
        %1658 = vmatpush1.msra.mxu0 %v1586
        %1659 = vmatprep.subr.mxu0 0.0
        %1660 = vmatpush1.msra.mxu0 %v1587
        %1661 = vmatprep.subr.mxu0 0.0
        %1662 = vmatpush1.msra.mxu0 %v1588
        %1663 = vmatprep.subr.mxu0 0.0
        %1664 = vmatpush1.msra.mxu0 %v1589
        %1665 = vmatprep.subr.mxu0 0.0
        %1666 = vmatpush1.msra.mxu0 %v1590
        %1667 = vmatprep.subr.mxu0 0.0
        %1668 = vmatpush1.msra.mxu0 %v1591
        %1669 = vmatprep.subr.mxu0 0.0
        %1670 = vmatpush1.msra.mxu0 %v1592
        %1671 = vmatprep.subr.mxu0 0.0
        %1672 = vmatpush1.msra.mxu0 %v1593
        %1673 = vmatprep.subr.mxu0 0.0
        %1674 = vmatpush1.msra.mxu0 %v1594
        %1675 = vmatprep.subr.mxu0 0.0
        %1676 = vmatpush1.msra.mxu0 %v1595
        %1677 = vmatprep.subr.mxu0 0.0
        %1678 = vmatpush1.msra.mxu0 %v1596
        %1679 = vmatprep.subr.mxu0 0.0
        %1680 = vmatpush1.msra.mxu0 0.0
        %1681 = vmatprep.subr.mxu0 0.0
        %1682 = vmatpush1.msra.mxu0 0.0
        %1683 = vmatprep.subr.mxu0 0.0
        %1684 = vmatpush1.msra.mxu0 0.0
        %1685 = vmatprep.subr.mxu0 0.0
        %1686 = vmatpush1.msra.mxu0 0.0
        %1687 = vmatprep.subr.mxu0 0.0
        %1688 = vmatpush1.msra.mxu0 0.0
        %1689 = vmatprep.subr.mxu0 0.0
        %1690 = vmatpush1.msra.mxu0 0.0
        %1691 = vmatprep.subr.mxu0 0.0
        %1692 = vmatpush1.msra.mxu0 0.0
        %1693 = vmatprep.subr.mxu0 0.0
        %1694 = vmatpush1.msra.mxu0 0.0
        %1695 = vmatprep.mubr.f32.mxu0 %v1605
        %1696 = vmatmul.mubr.f32.gmra.mrb[0].mxu0 %v1564
        %v1697 = vpop.f32.mrb[0].mxu0
        %v1698 = vadd.f32 %v1602, %v1697
        %v1699 = vpop.f32.mrb[0].mxu0
        %1700 = vmatprep.mubr.f32.mxu0 %v1608
        %1701 = vmatmul.mubr.f32.gmra.mrb[0].mxu0 %v1565
        %v1702 = vpop.f32.mrb[0].mxu0
        %v1703 = vadd.f32 %v1602, %v1702
        %v1704 = vpop.f32.mrb[0].mxu0
        %1705 = vmatprep.mubr.f32.mxu0 %v1611
        %1706 = vmatmul.mubr.f32.gmra.mrb[0].mxu0 %v1566
        %v1707 = vpop.f32.mrb[0].mxu0
        %v1708 = vadd.f32 %v1602, %v1707
        %v1709 = vpop.f32.mrb[0].mxu0
        %1710 = vmatprep.mubr.f32.mxu0 %v1614
        %1711 = vmatmul.mubr.f32.gmra.mrb[0].mxu0 %v1567
        %v1712 = vpop.f32.mrb[0].mxu0
        %v1713 = vadd.f32 %v1602, %v1712
        %v1714 = vpop.f32.mrb[0].mxu0
        %1715 = vmatprep.mubr.f32.mxu0 %v1617
        %1716 = vmatmul.mubr.f32.gmra.mrb[0].mxu0 %v1568
        %v1717 = vpop.f32.mrb[0].mxu0
        %v1718 = vadd.f32 %v1602, %v1717
        %v1719 = vpop.f32.mrb[0].mxu0
        %1720 = vmatprep.mubr.f32.mxu0 %v1620
        %1721 = vmatmul.mubr.f32.gmra.mrb[0].mxu0 %v1569
        %v1722 = vpop.f32.mrb[0].mxu0
        %v1723 = vadd.f32 %v1602, %v1722
        %v1724 = vpop.f32.mrb[0].mxu0
        %1725 = vmatprep.mubr.f32.mxu0 %v1623
        %1726 = vmatmul.mubr.f32.gmra.mrb[0].mxu0 %v1570
        %v1727 = vpop.f32.mrb[0].mxu0
        %v1728 = vadd.f32 %v1602, %v1727
        %v1729 = vpop.f32.mrb[0].mxu0
        %1730 = vmatprep.mubr.f32.mxu0 %v1626
        %1731 = vmatmul.mubr.f32.gmra.mrb[0].mxu0 %v1571
        %v1732 = vpop.f32.mrb[0].mxu0
        %v1733 = vadd.f32 %v1602, %v1732
        %v1734 = vpop.f32.mrb[0].mxu0
        %1735 = vmatprep.mubr.f32.mxu0 %v1629
        %1736 = vmatmul.mubr.f32.gmra.mrb[0].mxu0 %v1572
        %v1737 = vpop.f32.mrb[0].mxu0
        %v1738 = vadd.f32 %v1602, %v1737
        %v1739 = vpop.f32.mrb[0].mxu0
        %1740 = vdwg.mxu0
        %v1741 = vmax.f32 %v1698, 0.0
        %v1742 = vmax.f32 %v1703, 0.0
        %v1743 = vmax.f32 %v1708, 0.0
        %v1744 = vmax.f32 %v1713, 0.0
        %v1745 = vmax.f32 %v1718, 0.0
        %v1746 = vmax.f32 %v1723, 0.0
        %v1747 = vmax.f32 %v1728, 0.0
        %v1748 = vmax.f32 %v1733, 0.0
        %v1749 = vmax.f32 %v1738, 0.0
        %vm1750 = vcmask 261120
        %1751 = vst.msk [vmem:[#allocation4] sm:$0xff] %vm1750, %v1741
        %1752 = vst.msk [vmem:[#allocation4 + $0x8] sm:$0xff] %vm1750, %v1742
        %1753 = vst.msk [vmem:[#allocation4 + $0x10] sm:$0xff] %vm1750, %v1743
        %1754 = vst.msk [vmem:[#allocation4 + $0x18] sm:$0xff] %vm1750, %v1744
        %1755 = vst.msk [vmem:[#allocation4 + $0x20] sm:$0xff] %vm1750, %v1745
        %1756 = vst.msk [vmem:[#allocation4 + $0x28] sm:$0xff] %vm1750, %v1746
        %1757 = vst.msk [vmem:[#allocation4 + $0x30] sm:$0xff] %vm1750, %v1747
        %1758 = vst.msk [vmem:[#allocation4 + $0x38] sm:$0xff] %vm1750, %v1748
        %vm1759 = vcmask 257024
        %1760 = vst.msk [vmem:[#allocation4 + $0x40] sm:$0xf] %vm1759, %v1749
        %v1761 = vld [vmem:[#allocation4] ss:$2 sm:$0xff]
        %s1762 = scalar_lea.vmem [#allocation4], 16
        %v1763 = vld [vmem:[%s1762] ss:$2 sm:$0xff]
        %s1764 = scalar_lea.vmem [#allocation4], 32
        %v1765 = vld [vmem:[%s1764] ss:$2 sm:$0xff]
        %s1766 = scalar_lea.vmem [#allocation4], 48
        %v1767 = vld [vmem:[%s1766] ss:$2 sm:$0xff]
        %s1768 = scalar_lea.vmem [#allocation4], 64
        %v1769 = vld [vmem:[%s1768] ss:$2 sm:$0x3]
        %s1770 = scalar_lea.vmem [#allocation4], 1
        %v1771 = vld [vmem:[%s1770] ss:$2 sm:$0xff]
        %s1772 = scalar_lea.vmem [#allocation4], 17
        %v1773 = vld [vmem:[%s1772] ss:$2 sm:$0xff]
        %s1774 = scalar_lea.vmem [#allocation4], 33
        %v1775 = vld [vmem:[%s1774] ss:$2 sm:$0xff]
        %s1776 = scalar_lea.vmem [#allocation4], 49
        %v1777 = vld [vmem:[%s1776] ss:$2 sm:$0xff]
        %s1778 = scalar_lea.vmem [#allocation4], 65
        %v1779 = vld [vmem:[%s1778] ss:$2 sm:$0x3]
        %v1780 = vmax.f32 %v1761, %v1771
        %v1781 = vmax.f32 %v1763, %v1773
        %v1782 = vmax.f32 %v1765, %v1775
        %v1783 = vmax.f32 %v1767, %v1777
        %v1784 = vmax.f32 %v1769, %v1779
        %v1785 = vld [vmem:[%s7] sm:$0xff]
        %v1786 = vld [vmem:[%s8] sm:$0xff]
        %1788 = vset.pattern.permute.xlu0 0
        %1789 = vperm.xlu0 %1788, %v1786
        %v1790 = vpop.permute.xlu0 %1789
        %vm1792 = vcmask 277504
        %v1794 = vsel %vm1792, %v1785, 0
        %vm1796 = vcmask 1041408
        %v1798 = vsel %vm1796, %v1784, 0
        %1800 = vmatprep.subr.mxu0 0.0
        %1801 = vmatpush1.msra.mxu0 %v1780
        %1802 = vmatprep.subr.mxu0 0.0
        %1803 = vmatpush1.msra.mxu0 %v1781
        %1804 = vmatprep.subr.mxu0 0.0
        %1805 = vmatpush1.msra.mxu0 %v1782
        %1806 = vmatprep.subr.mxu0 0.0
        %1807 = vmatpush1.msra.mxu0 %v1783
        %1808 = vmatprep.subr.mxu0 0.0
        %1809 = vmatpush1.msra.mxu0 %v1798
        %1810 = vmatprep.subr.mxu0 0.0
        %1811 = vmatpush1.msra.mxu0 0.0
        %1812 = vmatprep.subr.mxu0 0.0
        %1813 = vmatpush1.msra.mxu0 0.0
        %1814 = vmatprep.subr.mxu0 0.0
        %1815 = vmatpush1.msra.mxu0 0.0
        %1816 = vmatprep.subr.mxu0 0.0
        %1817 = vmatpush1.msra.mxu0 0.0
        %1818 = vmatprep.subr.mxu0 0.0
        %1819 = vmatpush1.msra.mxu0 0.0
        %1820 = vmatprep.subr.mxu0 0.0
        %1821 = vmatpush1.msra.mxu0 0.0
        %1822 = vmatprep.subr.mxu0 0.0
        %1823 = vmatpush1.msra.mxu0 0.0
        %1824 = vmatprep.subr.mxu0 0.0
        %1825 = vmatpush1.msra.mxu0 0.0
        %1826 = vmatprep.subr.mxu0 0.0
        %1827 = vmatpush1.msra.mxu0 0.0
        %1828 = vmatprep.subr.mxu0 0.0
        %1829 = vmatpush1.msra.mxu0 0.0
        %1830 = vmatprep.subr.mxu0 0.0
        %1831 = vmatpush1.msra.mxu0 0.0
        %1832 = vmatprep.subr.mxu0 0.0
        %1833 = vmatpush1.msra.mxu0 0.0
        %1834 = vmatprep.subr.mxu0 0.0
        %1835 = vmatpush1.msra.mxu0 0.0
        %1836 = vmatprep.subr.mxu0 0.0
        %1837 = vmatpush1.msra.mxu0 0.0
        %1838 = vmatprep.subr.mxu0 0.0
        %1839 = vmatpush1.msra.mxu0 0.0
        %1840 = vmatprep.subr.mxu0 0.0
        %1841 = vmatpush1.msra.mxu0 0.0
        %1842 = vmatprep.subr.mxu0 0.0
        %1843 = vmatpush1.msra.mxu0 0.0
        %1844 = vmatprep.subr.mxu0 0.0
        %1845 = vmatpush1.msra.mxu0 0.0
        %1846 = vmatprep.subr.mxu0 0.0
        %1847 = vmatpush1.msra.mxu0 0.0
        %1848 = vmatprep.subr.mxu0 0.0
        %1849 = vmatpush1.msra.mxu0 0.0
        %1850 = vmatprep.subr.mxu0 0.0
        %1851 = vmatpush1.msra.mxu0 0.0
        %1852 = vmatprep.subr.mxu0 0.0
        %1853 = vmatpush1.msra.mxu0 0.0
        %1854 = vmatprep.subr.mxu0 0.0
        %1855 = vmatpush1.msra.mxu0 0.0
        %1856 = vmatprep.subr.mxu0 0.0
        %1857 = vmatpush1.msra.mxu0 0.0
        %1858 = vmatprep.subr.mxu0 0.0
        %1859 = vmatpush1.msra.mxu0 0.0
        %1860 = vmatprep.subr.mxu0 0.0
        %1861 = vmatpush1.msra.mxu0 0.0
        %1862 = vmatprep.subr.mxu0 0.0
        %1863 = vmatpush1.msra.mxu0 0.0
        %1864 = vmatprep.mubr.f32.mxu0 0.0
        %1865 = vmatmul.mubr.f32.gmra.mrb[0].mxu0 %v1794
        %v1866 = vpop.f32.mrb[0].mxu0
        %v1867 = vadd.f32 %v1790, %v1866
        %v1868 = vpop.f32.mrb[0].mxu0
        %1869 = vdwg.mxu0
        %1870 = vst.msk [vmem:[%s326] sm:$0xff] %vm1750, %v1867
        %s1871 = sand.u32 %s225, 1
        %s1872 = scalar_lea.sflag [#allocation6], %s1871
        %s1873 = sand.u32 %s225, 1
        %s1874 = smul.addr %s1873, 8
        %s1875 = scalar_lea.vmem [#allocation5], %s1874
        // Predicated region
        $region57: #{tpu_custom_call.1} parent=55 // pred_check
          %p1876 = pneg %p235
        $region58: #{tpu_custom_call.1} parent=55 // pred_check_branch
          %1878 = sbr.rel (%p1876) target = $region60
        $region59: #{tpu_custom_call.1} parent=55 // pred_region
          %s1880 = ssub.s32 128, 128
          %1881 = vsyncadd %s1872, %s1880
          %s1882 = smul.addr %s23, 128
          %s1883 = scalar_lea.hbm %s9, %s1882
          %s1885 = sshll.u32 %s1875, 4
          %s1886 = int_to_ptr.vmem [resolvable:$true] %s1885
          %1888 = dma.vmem_to_hbm [thread:$0]  %s1886, 128, %s1883, %s1872
        $region60: #{tpu_custom_call.1} parent=55 // pred_fallthru
          _
      $region56: #{tpu_custom_call.1} parent=5 // pred_fallthru
        _
      %p1889 = scmp.le.s32.totalorder 2, %s18
      // Predicated region
      $region61: #{tpu_custom_call.1} parent=5 // pred_check
        %p1890 = pneg %p1889
      $region62: #{tpu_custom_call.1} parent=5 // pred_check_branch
        %1892 = sbr.rel (%p1890) target = $region64
      $region63: #{tpu_custom_call.1} parent=5 // pred_region
        %s1893 = ssub.s32 %s18, 2
        // Predicated region
        $region65: #{tpu_custom_call.1} parent=63 // pred_check
          %p1894 = pneg %p241
        $region66: #{tpu_custom_call.1} parent=63 // pred_check_branch
          %1896 = sbr.rel (%p1894) target = $region68
        $region67: #{tpu_custom_call.1} parent=63 // pred_region
          %s1897 = sand.u32 %s226, 1
          %s1898 = scalar_lea.sflag [#allocation6], %s1897
          %s1899 = sand.u32 %s226, 1
          %s1900 = smul.addr %s1899, 8
          %s1901 = scalar_lea.vmem [#allocation5], %s1900
          %1902 = dma.done %s1898, 128
        $region68: #{tpu_custom_call.1} parent=63 // pred_fallthru
          _
      $region64: #{tpu_custom_call.1} parent=5 // pred_fallthru
        _
    $region6: #{tpu_custom_call.1} parent=1 // loop_footer
      %s22 = sadd.s32 1, %s18
    $region7: #{tpu_custom_call.1} parent=1 // loop_footer_branch
      %17 = sbr.rel target = $region3
    $region8: #{tpu_custom_call.1} parent=1 // loop_exit
      _
    %1903 = vsyncpa [#allocation6], 1
    %s1904 = scalar_lea.sflag [#allocation6], 1
    %1905 = vsyncpa %s1904, 1

</llo_original>
